<compile_context>
chip_gen: v7x
topology: tpu7x:2x2x1
jax: 0.10.0
libtpu: 0.0.40
codegen_flags: <defaults>
</compile_context>

<pallas_src>
import functools

import jax
import jax.numpy as jnp
import numpy as np
from jax import lax
from jax.experimental import pallas as pl
from jax.experimental.pallas import tpu as pltpu


# ---------------------------------------------------------------------------
# Fused Pallas kernel: one grid step == one branch (0: policy, 1: value)
# ---------------------------------------------------------------------------
def custom_network_kernel(x_ref, cw_ref, cb_ref, hd_ref, out_ref):
    x = x_ref[...]                               # (B*L, F) time-major rows, feature lanes
    BL, F = x.shape
    B = out_ref.shape[1]
    O = out_ref.shape[2]
    L = BL // B
    C = cw_ref.shape[-1]                         # TCN channel width (16) == conv-slab row slot

    f32 = jnp.float32
    dot = functools.partial(jnp.dot, preferred_element_type=f32)

    # ---- causal shift as a matmul: shifted[t] = h[t-d], zero for t < d, batch-blocked ----
    r = lax.broadcasted_iota(jnp.int32, (BL, BL), 0)
    c = lax.broadcasted_iota(jnp.int32, (BL, BL), 1)

    def shift_mat(d):
        return ((r - c == d) & (r % L >= d)).astype(f32)

    cb = cb_ref[0]                               # (8, C) conv / downsample biases

    def W(k, cin=None):                          # k-th packed conv matrix, shape (cin, C)
        cin = C if cin is None else cin
        return cw_ref[0, k * C:k * C + cin, :]

    def conv(h, wp, wc, b, S):
        # dilated causal conv, kernel_size=2:  out[t] = Wprev @ h[t-d] + Wcur @ h[t] + b
        return dot(S, dot(h, wp)) + dot(h, wc) + b

    def tblock(h, wp1, wc1, b1, wp2, wc2, b2, S, res):
        a = jax.nn.relu(conv(h, wp1, wc1, b1, S))
        a = jax.nn.relu(conv(a, wp2, wc2, b2, S))
        return jax.nn.relu(a + res)

    # ---- TemporalConvNet (16,16,16), k=2, dilations 1/2/4; block 0 has a 1x1 downsample ----
    res0 = dot(x, W(4, F)) + cb[2:3]
    h = tblock(x, W(0, F), W(1, F), cb[0:1], W(2), W(3), cb[1:2], shift_mat(1), res0)
    h = tblock(h, W(5), W(6), cb[3:4], W(7), W(8), cb[4:5], shift_mat(2), h)
    h = tblock(h, W(9), W(10), cb[5:6], W(11), W(12), cb[6:7], shift_mat(4), h)

    # ---- heads: gather last timestep per batch row with a 0/1 selector matmul ----
    rb = lax.broadcasted_iota(jnp.int32, (B, BL), 0)
    cbl = lax.broadcasted_iota(jnp.int32, (B, BL), 1)
    sel = (cbl == rb * L + (L - 1)).astype(f32)  # (B, BL)
    x_last = dot(sel, x)                         # (B, F)   == features[:, -F:]
    conv_feat = dot(sel, h)                      # (B, C)   == tcn(x)[:, :, -1]

    l1w = hd_ref[0, 0:F, :]                      # (F, O)  (lanes >= 32 are zero)
    l2a = hd_ref[0, C:C + O, :]                  # (O, O)  (rows  >= 32 are zero)
    l2b = hd_ref[0, C + O:C + O + C, :]          # (C, O)
    l1b = hd_ref[0, C + O + C:C + O + C + 1, :]        # (1, O)
    l2bias = hd_ref[0, C + O + C + 1:C + O + C + 2, :]  # (1, O)

    l1 = jax.nn.relu(dot(x_last, l1w) + l1b)     # (B, O); lanes >= 32 are exactly 0
    out_ref[0] = jax.nn.relu(dot(l1, l2a) + dot(conv_feat, l2b) + l2bias)


# ---------------------------------------------------------------------------
# Wrapper: one launch for both branches
# ---------------------------------------------------------------------------
@functools.partial(jax.jit, static_argnums=(1, 2, 4))
def custom_network_forward(features, feat_dim, hist_len, packed, out_dim):
    conv_w, conv_b, head = packed
    B = features.shape[0]
    x2d = features.reshape(B * hist_len, feat_dim)       # pure reshape, no copy

    out = pl.pallas_call(
        custom_network_kernel,
        out_shape=jax.ShapeDtypeStruct((2, B, out_dim), jnp.float32),
        grid=(2,),                                        # branch axis: 0 = pi, 1 = vf
        in_specs=[
            pl.BlockSpec((B * hist_len, feat_dim), lambda b: (0, 0)),
            pl.BlockSpec((1,) + conv_w.shape[1:], lambda b: (b, 0, 0)),
            pl.BlockSpec((1,) + conv_b.shape[1:], lambda b: (b, 0, 0)),
            pl.BlockSpec((1,) + head.shape[1:], lambda b: (b, 0, 0)),
        ],
        out_specs=pl.BlockSpec((1, B, out_dim), lambda b: (b, 0, 0)),
        compiler_params=pltpu.CompilerParams(
            dimension_semantics=("parallel",)),
    )(x2d, conv_w, conv_b, head)
    return out[0], out[1]


# ---------------------------------------------------------------------------
# Parameter setup (deterministic, PyTorch layouts) and slab packing
# ---------------------------------------------------------------------------
def init_branch_params(key, feat_dim, ch=16, k=2, l1_dim=32, out_dim=64):
    # weight_norm at init (g = ||v||) is identity; normal_(0, 0.01) matches init_weights.
    ks = iter(jax.random.split(key, 18))

    def nrm(shape, scale=0.01):
        return (scale * jax.random.normal(next(ks), shape)).astype(jnp.float32)

    blocks = []
    in_ch = feat_dim
    for _ in range(3):
        blk = {'w1': nrm((ch, in_ch, k)), 'b1': nrm((ch,)),
               'w2': nrm((ch, ch, k)),    'b2': nrm((ch,))}
        if in_ch != ch:
            blk['wd'] = nrm((ch, in_ch, 1))
            blk['bd'] = nrm((ch,))
        blocks.append(blk)
        in_ch = ch
    return {'blocks': blocks,
            'l1_w': nrm((l1_dim, feat_dim)), 'l1_b': nrm((l1_dim,)),
            'l2_w': nrm((out_dim, l1_dim + ch)), 'l2_b': nrm((out_dim,))}


def pack_params(params_pair, feat_dim, ch=16, l1_dim=32, out_dim=64):
    """Pack both branches' torch-layout params into 3 branch-stacked slabs."""
    def one(p):
        # conv slab: 13 matmul matrices, each in a (ch, ch) row-slot (Cin zero-padded)
        def pad_ci(w_t):                          # (cin, ch) -> (ch, ch)
            return jnp.zeros((ch, ch), jnp.float32).at[:w_t.shape[0], :].set(w_t)

        mats = []
        for i, blk in enumerate(p['blocks']):
            mats += [pad_ci(blk['w1'][:, :, 0].T), pad_ci(blk['w1'][:, :, 1].T),
                     pad_ci(blk['w2'][:, :, 0].T), pad_ci(blk['w2'][:, :, 1].T)]
            if i == 0:
                mats.append(pad_ci(blk['wd'][:, :, 0].T))
        conv_w = jnp.concatenate(mats, axis=0)                          # (13*ch, ch)

        b = p['blocks']
        conv_b = jnp.stack([b[0]['b1'], b[0]['b2'], b[0]['bd'],
                            b[1]['b1'], b[1]['b2'], b[2]['b1'], b[2]['b2'],
                            jnp.zeros((ch,), jnp.float32)], axis=0)     # (8, ch)

        # head slab rows: [l1_w(pad) | l2a(pad) | l2b | l1_b | l2_b], width out_dim
        rows = ch + out_dim + ch + 2
        R = ((rows + 7) // 8) * 8
        head = jnp.zeros((R, out_dim), jnp.float32)
        head = head.at[:feat_dim, :l1_dim].set(p['l1_w'].T)
        head = head.at[ch:ch + l1_dim, :].set(p['l2_w'][:, :l1_dim].T)
        head = head.at[ch + out_dim:ch + out_dim + ch, :].set(p['l2_w'][:, l1_dim:].T)
        head = head.at[ch + out_dim + ch, :l1_dim].set(p['l1_b'])
        head = head.at[ch + out_dim + ch + 1, :].set(p['l2_b'])
        return conv_w, conv_b, head

    cw0, cb0, hd0 = one(params_pair[0])
    cw1, cb1, hd1 = one(params_pair[1])
    return (jnp.stack([cw0, cw1]), jnp.stack([cb0, cb1]), jnp.stack([hd0, hd1]))


# ---------------------------------------------------------------------------
# Pure-JAX reference (independent math via lax.conv_general_dilated, NCW layout)
# ---------------------------------------------------------------------------
def _ref_causal_conv(x_ncw, w, b, d):
    L = x_ncw.shape[2]
    y = lax.conv_general_dilated(x_ncw, w, window_strides=(1,), padding=[(d, d)],
                                 rhs_dilation=(d,),
                                 dimension_numbers=('NCH', 'OIH', 'NCH'))
    return y[:, :, :L] + b[None, :, None]        # chomp trailing padding


def _ref_block(x, blk, d):
    h = jax.nn.relu(_ref_causal_conv(x, blk['w1'], blk['b1'], d))
    h = jax.nn.relu(_ref_causal_conv(h, blk['w2'], blk['b2'], d))
    if 'wd' in blk:
        res = lax.conv_general_dilated(x, blk['wd'], (1,), [(0, 0)],
                                       dimension_numbers=('NCH', 'OIH', 'NCH'))
        res = res + blk['bd'][None, :, None]
    else:
        res = x
    return jax.nn.relu(h + res)


def ref_branch(features, feat_dim, hist_len, p):
    B = features.shape[0]
    x_ncw = jnp.transpose(features.reshape(B, hist_len, feat_dim), (0, 2, 1))
    x_last = features[:, -feat_dim:]
    h = x_ncw
    for i, d in enumerate((1, 2, 4)):
        h = _ref_block(h, p['blocks'][i], d)
    conv_feat = h[:, :, -1]
    l1 = jax.nn.relu(x_last @ p['l1_w'].T + p['l1_b'])
    cat = jnp.concatenate([l1, conv_feat], axis=1)
    return jax.nn.relu(cat @ p['l2_w'].T + p['l2_b'])


# ---------------------------------------------------------------------------
if __name__ == "__main__":
    # TODO(synk): nn.Dropout (p=0.0) and the weight_norm reparameterization (identity at init,
    # g = ||v||) are folded away rather than modeled as explicit ops.
    feat_dim, hist_len, batch = 8, 8, 2
    last_layer_dim = 64

    key = jax.random.PRNGKey(0)
    k_feat, k_pi, k_vf = jax.random.split(key, 3)
    features = jax.random.normal(k_feat, (batch, hist_len * feat_dim), jnp.float32)

    pi_params = init_branch_params(k_pi, feat_dim, out_dim=last_layer_dim)
    vf_params = init_branch_params(k_vf, feat_dim, out_dim=last_layer_dim)
    packed = pack_params((pi_params, vf_params), feat_dim, out_dim=last_layer_dim)

    latent_pi, latent_vf = custom_network_forward(features, feat_dim, hist_len,
                                                  packed, last_layer_dim)
    jax.block_until_ready((latent_pi, latent_vf))

    ref_pi = ref_branch(features, feat_dim, hist_len, pi_params)
    ref_vf = ref_branch(features, feat_dim, hist_len, vf_params)
    np.testing.assert_allclose(np.asarray(latent_pi), np.asarray(ref_pi), rtol=1e-4, atol=2e-6)
    np.testing.assert_allclose(np.asarray(latent_vf), np.asarray(ref_vf), rtol=1e-4, atol=2e-6)

    print("KERNEL_OK")
</pallas_src>

<mosaic_0001>
module attributes {stable_mosaic.version = 11 : i64} {
  func.func @custom_network_kernel(%arg0: i32, %arg1: memref<16x8xf32, #tpu.memory_space<vmem>>, %arg2: memref<1x208x16xf32, #tpu.memory_space<vmem>>, %arg3: memref<1x8x16xf32, #tpu.memory_space<vmem>>, %arg4: memref<1x104x64xf32, #tpu.memory_space<vmem>>, %arg5: memref<1x2x64xf32, #tpu.memory_space<vmem>>) attributes {dimension_semantics = [#tpu.dimension_semantics<parallel>], iteration_bounds = array<i64: 2>, scalar_prefetch = 0 : i64, scratch_operands = 0 : i64, tpu.core_type = #tpu.core_type<tc>, window_params = [{pipeline_mode = #tpu.pipeline_mode<synchronous>, transform_indices = @transform_0, window_bounds = array<i64: 16, 8>}, {transform_indices = @transform_1, window_bounds = array<i64: 1, 208, 16>}, {transform_indices = @transform_2, window_bounds = array<i64: 1, 8, 16>}, {transform_indices = @transform_3, window_bounds = array<i64: 1, 104, 64>}, {transform_indices = @transform_4, window_bounds = array<i64: 1, 2, 64>}]} {
    %c0 = arith.constant 0 : index
    %c0_0 = arith.constant 0 : index
    %0 = vector.load %arg1[%c0, %c0_0] : memref<16x8xf32, #tpu.memory_space<vmem>>, vector<16x8xf32>
    %1 = tpu.iota {dimensions = array<i32: 0>} : vector<16x16xi32>
    %2 = tpu.iota {dimensions = array<i32: 1>} : vector<16x16xi32>
    %c0_1 = arith.constant 0 : index
    %c0_2 = arith.constant 0 : index
    %c0_3 = arith.constant 0 : index
    %3 = vector.load %arg3[%c0_1, %c0_2, %c0_3] : memref<1x8x16xf32, #tpu.memory_space<vmem>>, vector<1x8x16xf32>
    %4 = vector.shape_cast %3 : vector<1x8x16xf32> to vector<8x16xf32>
    %c0_4 = arith.constant 0 : index
    %c64 = arith.constant 64 : index
    %c0_5 = arith.constant 0 : index
    %5 = vector.load %arg2[%c0_4, %c64, %c0_5] : memref<1x208x16xf32, #tpu.memory_space<vmem>>, vector<1x8x16xf32>
    %6 = vector.shape_cast %5 : vector<1x8x16xf32> to vector<8x16xf32>
    %cst = arith.constant dense<0.000000e+00> : vector<16x16xf32>
    %7 = tpu.matmul %0, %6, %cst {dimension_numbers = #tpu.dot_dimension_numbers<[1], [0], [0], [1], [0, 0, 1, 1], [], []>} : vector<16x8xf32>, vector<8x16xf32>, vector<16x16xf32> -> vector<16x16xf32>
    %8 = vector.extract_strided_slice %4 {offsets = [2, 0], sizes = [1, 16], strides = [1, 1]} : vector<8x16xf32> to vector<1x16xf32>
    %9 = vector.broadcast %8 : vector<1x16xf32> to vector<16x16xf32>
    %10 = arith.addf %7, %9 : vector<16x16xf32>
    %c0_6 = arith.constant 0 : index
    %c0_7 = arith.constant 0 : index
    %c0_8 = arith.constant 0 : index
    %11 = vector.load %arg2[%c0_6, %c0_7, %c0_8] : memref<1x208x16xf32, #tpu.memory_space<vmem>>, vector<1x8x16xf32>
    %12 = vector.shape_cast %11 : vector<1x8x16xf32> to vector<8x16xf32>
    %c0_9 = arith.constant 0 : index
    %c16 = arith.constant 16 : index
    %c0_10 = arith.constant 0 : index
    %13 = vector.load %arg2[%c0_9, %c16, %c0_10] : memref<1x208x16xf32, #tpu.memory_space<vmem>>, vector<1x8x16xf32>
    %14 = vector.shape_cast %13 : vector<1x8x16xf32> to vector<8x16xf32>
    %15 = vector.extract_strided_slice %4 {offsets = [0, 0], sizes = [1, 16], strides = [1, 1]} : vector<8x16xf32> to vector<1x16xf32>
    %c0_11 = arith.constant 0 : index
    %c32 = arith.constant 32 : index
    %c0_12 = arith.constant 0 : index
    %16 = vector.load %arg2[%c0_11, %c32, %c0_12] : memref<1x208x16xf32, #tpu.memory_space<vmem>>, vector<1x16x16xf32>
    %17 = vector.shape_cast %16 : vector<1x16x16xf32> to vector<16x16xf32>
    %c0_13 = arith.constant 0 : index
    %c48 = arith.constant 48 : index
    %c0_14 = arith.constant 0 : index
    %18 = vector.load %arg2[%c0_13, %c48, %c0_14] : memref<1x208x16xf32, #tpu.memory_space<vmem>>, vector<1x16x16xf32>
    %19 = vector.shape_cast %18 : vector<1x16x16xf32> to vector<16x16xf32>
    %20 = vector.extract_strided_slice %4 {offsets = [1, 0], sizes = [1, 16], strides = [1, 1]} : vector<8x16xf32> to vector<1x16xf32>
    %21 = arith.subi %1, %2 : vector<16x16xi32>
    %c1_i32 = arith.constant 1 : i32
    %22 = vector.broadcast %c1_i32 : i32 to vector<16x16xi32>
    %23 = arith.cmpi eq, %21, %22 : vector<16x16xi32>
    %c8_i32 = arith.constant 8 : i32
    %c0_i32 = arith.constant 0 : i32
    %24 = arith.cmpi eq, %c8_i32, %c0_i32 : i32
    %c1_i32_15 = arith.constant 1 : i32
    %25 = arith.select %24, %c1_i32_15, %c8_i32 : i32
    %26 = vector.broadcast %25 : i32 to vector<16x16xi32>
    %27 = arith.remsi %1, %26 : vector<16x16xi32>
    %c0_i32_16 = arith.constant 0 : i32
    %28 = vector.broadcast %c0_i32_16 : i32 to vector<16x16xi32>
    %29 = arith.cmpi ne, %27, %28 : vector<16x16xi32>
    %c0_i32_17 = arith.constant 0 : i32
    %30 = vector.broadcast %c0_i32_17 : i32 to vector<16x16xi32>
    %31 = arith.cmpi slt, %27, %30 : vector<16x16xi32>
    %c0_i32_18 = arith.constant 0 : i32
    %32 = arith.cmpi slt, %25, %c0_i32_18 : i32
    %33 = vector.broadcast %32 : i1 to vector<16x16xi1>
    %34 = vector.broadcast %33 : vector<16x16xi1> to vector<16x16xi1>
    %35 = arith.xori %31, %34 : vector<16x16xi1>
    %36 = arith.andi %35, %29 : vector<16x16xi1>
    %37 = vector.broadcast %25 : i32 to vector<16x16xi32>
    %38 = arith.addi %27, %37 : vector<16x16xi32>
    %39 = arith.select %36, %38, %27 : vector<16x16xi1>, vector<16x16xi32>
    %c1_i32_19 = arith.constant 1 : i32
    %40 = vector.broadcast %c1_i32_19 : i32 to vector<16x16xi32>
    %41 = arith.cmpi sge, %39, %40 : vector<16x16xi32>
    %42 = arith.andi %23, %41 : vector<16x16xi1>
    %43 = arith.extui %42 : vector<16x16xi1> to vector<16x16xi32>
    %44 = arith.sitofp %43 : vector<16x16xi32> to vector<16x16xf32>
    %cst_20 = arith.constant dense<0.000000e+00> : vector<16x16xf32>
    %45 = tpu.matmul %0, %12, %cst_20 {dimension_numbers = #tpu.dot_dimension_numbers<[1], [0], [0], [1], [0, 0, 1, 1], [], []>} : vector<16x8xf32>, vector<8x16xf32>, vector<16x16xf32> -> vector<16x16xf32>
    %cst_21 = arith.constant dense<0.000000e+00> : vector<16x16xf32>
    %46 = tpu.matmul %44, %45, %cst_21 {dimension_numbers = #tpu.dot_dimension_numbers<[1], [0], [0], [1], [0, 0, 1, 1], [], []>} : vector<16x16xf32>, vector<16x16xf32>, vector<16x16xf32> -> vector<16x16xf32>
    %cst_22 = arith.constant dense<0.000000e+00> : vector<16x16xf32>
    %47 = tpu.matmul %0, %14, %cst_22 {dimension_numbers = #tpu.dot_dimension_numbers<[1], [0], [0], [1], [0, 0, 1, 1], [], []>} : vector<16x8xf32>, vector<8x16xf32>, vector<16x16xf32> -> vector<16x16xf32>
    %48 = arith.addf %46, %47 : vector<16x16xf32>
    %49 = vector.broadcast %15 : vector<1x16xf32> to vector<16x16xf32>
    %50 = arith.addf %48, %49 : vector<16x16xf32>
    %cst_23 = arith.constant 0.000000e+00 : f32
    %51 = vector.broadcast %cst_23 : f32 to vector<16x16xf32>
    %52 = arith.maximumf %50, %51 : vector<16x16xf32>
    %cst_24 = arith.constant dense<0.000000e+00> : vector<16x16xf32>
    %53 = tpu.matmul %52, %17, %cst_24 {dimension_numbers = #tpu.dot_dimension_numbers<[1], [0], [0], [1], [0, 0, 1, 1], [], []>} : vector<16x16xf32>, vector<16x16xf32>, vector<16x16xf32> -> vector<16x16xf32>
    %cst_25 = arith.constant dense<0.000000e+00> : vector<16x16xf32>
    %54 = tpu.matmul %44, %53, %cst_25 {dimension_numbers = #tpu.dot_dimension_numbers<[1], [0], [0], [1], [0, 0, 1, 1], [], []>} : vector<16x16xf32>, vector<16x16xf32>, vector<16x16xf32> -> vector<16x16xf32>
    %cst_26 = arith.constant dense<0.000000e+00> : vector<16x16xf32>
    %55 = tpu.matmul %52, %19, %cst_26 {dimension_numbers = #tpu.dot_dimension_numbers<[1], [0], [0], [1], [0, 0, 1, 1], [], []>} : vector<16x16xf32>, vector<16x16xf32>, vector<16x16xf32> -> vector<16x16xf32>
    %56 = arith.addf %54, %55 : vector<16x16xf32>
    %57 = vector.broadcast %20 : vector<1x16xf32> to vector<16x16xf32>
    %58 = arith.addf %56, %57 : vector<16x16xf32>
    %cst_27 = arith.constant 0.000000e+00 : f32
    %59 = vector.broadcast %cst_27 : f32 to vector<16x16xf32>
    %60 = arith.maximumf %58, %59 : vector<16x16xf32>
    %61 = arith.addf %60, %10 : vector<16x16xf32>
    %cst_28 = arith.constant 0.000000e+00 : f32
    %62 = vector.broadcast %cst_28 : f32 to vector<16x16xf32>
    %63 = arith.maximumf %61, %62 : vector<16x16xf32>
    %c0_29 = arith.constant 0 : index
    %c80 = arith.constant 80 : index
    %c0_30 = arith.constant 0 : index
    %64 = vector.load %arg2[%c0_29, %c80, %c0_30] : memref<1x208x16xf32, #tpu.memory_space<vmem>>, vector<1x16x16xf32>
    %65 = vector.shape_cast %64 : vector<1x16x16xf32> to vector<16x16xf32>
    %c0_31 = arith.constant 0 : index
    %c96 = arith.constant 96 : index
    %c0_32 = arith.constant 0 : index
    %66 = vector.load %arg2[%c0_31, %c96, %c0_32] : memref<1x208x16xf32, #tpu.memory_space<vmem>>, vector<1x16x16xf32>
    %67 = vector.shape_cast %66 : vector<1x16x16xf32> to vector<16x16xf32>
    %68 = vector.extract_strided_slice %4 {offsets = [3, 0], sizes = [1, 16], strides = [1, 1]} : vector<8x16xf32> to vector<1x16xf32>
    %c0_33 = arith.constant 0 : index
    %c112 = arith.constant 112 : index
    %c0_34 = arith.constant 0 : index
    %69 = vector.load %arg2[%c0_33, %c112, %c0_34] : memref<1x208x16xf32, #tpu.memory_space<vmem>>, vector<1x16x16xf32>
    %70 = vector.shape_cast %69 : vector<1x16x16xf32> to vector<16x16xf32>
    %c0_35 = arith.constant 0 : index
    %c128 = arith.constant 128 : index
    %c0_36 = arith.constant 0 : index
    %71 = vector.load %arg2[%c0_35, %c128, %c0_36] : memref<1x208x16xf32, #tpu.memory_space<vmem>>, vector<1x16x16xf32>
    %72 = vector.shape_cast %71 : vector<1x16x16xf32> to vector<16x16xf32>
    %73 = vector.extract_strided_slice %4 {offsets = [4, 0], sizes = [1, 16], strides = [1, 1]} : vector<8x16xf32> to vector<1x16xf32>
    %74 = arith.subi %1, %2 : vector<16x16xi32>
    %c2_i32 = arith.constant 2 : i32
    %75 = vector.broadcast %c2_i32 : i32 to vector<16x16xi32>
    %76 = arith.cmpi eq, %74, %75 : vector<16x16xi32>
    %c8_i32_37 = arith.constant 8 : i32
    %c0_i32_38 = arith.constant 0 : i32
    %77 = arith.cmpi eq, %c8_i32_37, %c0_i32_38 : i32
    %c1_i32_39 = arith.constant 1 : i32
    %78 = arith.select %77, %c1_i32_39, %c8_i32_37 : i32
    %79 = vector.broadcast %78 : i32 to vector<16x16xi32>
    %80 = arith.remsi %1, %79 : vector<16x16xi32>
    %c0_i32_40 = arith.constant 0 : i32
    %81 = vector.broadcast %c0_i32_40 : i32 to vector<16x16xi32>
    %82 = arith.cmpi ne, %80, %81 : vector<16x16xi32>
    %c0_i32_41 = arith.constant 0 : i32
    %83 = vector.broadcast %c0_i32_41 : i32 to vector<16x16xi32>
    %84 = arith.cmpi slt, %80, %83 : vector<16x16xi32>
    %c0_i32_42 = arith.constant 0 : i32
    %85 = arith.cmpi slt, %78, %c0_i32_42 : i32
    %86 = vector.broadcast %85 : i1 to vector<16x16xi1>
    %87 = vector.broadcast %86 : vector<16x16xi1> to vector<16x16xi1>
    %88 = arith.xori %84, %87 : vector<16x16xi1>
    %89 = arith.andi %88, %82 : vector<16x16xi1>
    %90 = vector.broadcast %78 : i32 to vector<16x16xi32>
    %91 = arith.addi %80, %90 : vector<16x16xi32>
    %92 = arith.select %89, %91, %80 : vector<16x16xi1>, vector<16x16xi32>
    %c2_i32_43 = arith.constant 2 : i32
    %93 = vector.broadcast %c2_i32_43 : i32 to vector<16x16xi32>
    %94 = arith.cmpi sge, %92, %93 : vector<16x16xi32>
    %95 = arith.andi %76, %94 : vector<16x16xi1>
    %96 = arith.extui %95 : vector<16x16xi1> to vector<16x16xi32>
    %97 = arith.sitofp %96 : vector<16x16xi32> to vector<16x16xf32>
    %cst_44 = arith.constant dense<0.000000e+00> : vector<16x16xf32>
    %98 = tpu.matmul %63, %65, %cst_44 {dimension_numbers = #tpu.dot_dimension_numbers<[1], [0], [0], [1], [0, 0, 1, 1], [], []>} : vector<16x16xf32>, vector<16x16xf32>, vector<16x16xf32> -> vector<16x16xf32>
    %cst_45 = arith.constant dense<0.000000e+00> : vector<16x16xf32>
    %99 = tpu.matmul %97, %98, %cst_45 {dimension_numbers = #tpu.dot_dimension_numbers<[1], [0], [0], [1], [0, 0, 1, 1], [], []>} : vector<16x16xf32>, vector<16x16xf32>, vector<16x16xf32> -> vector<16x16xf32>
    %cst_46 = arith.constant dense<0.000000e+00> : vector<16x16xf32>
    %100 = tpu.matmul %63, %67, %cst_46 {dimension_numbers = #tpu.dot_dimension_numbers<[1], [0], [0], [1], [0, 0, 1, 1], [], []>} : vector<16x16xf32>, vector<16x16xf32>, vector<16x16xf32> -> vector<16x16xf32>
    %101 = arith.addf %99, %100 : vector<16x16xf32>
    %102 = vector.broadcast %68 : vector<1x16xf32> to vector<16x16xf32>
    %103 = arith.addf %101, %102 : vector<16x16xf32>
    %cst_47 = arith.constant 0.000000e+00 : f32
    %104 = vector.broadcast %cst_47 : f32 to vector<16x16xf32>
    %105 = arith.maximumf %103, %104 : vector<16x16xf32>
    %cst_48 = arith.constant dense<0.000000e+00> : vector<16x16xf32>
    %106 = tpu.matmul %105, %70, %cst_48 {dimension_numbers = #tpu.dot_dimension_numbers<[1], [0], [0], [1], [0, 0, 1, 1], [], []>} : vector<16x16xf32>, vector<16x16xf32>, vector<16x16xf32> -> vector<16x16xf32>
    %cst_49 = arith.constant dense<0.000000e+00> : vector<16x16xf32>
    %107 = tpu.matmul %97, %106, %cst_49 {dimension_numbers = #tpu.dot_dimension_numbers<[1], [0], [0], [1], [0, 0, 1, 1], [], []>} : vector<16x16xf32>, vector<16x16xf32>, vector<16x16xf32> -> vector<16x16xf32>
    %cst_50 = arith.constant dense<0.000000e+00> : vector<16x16xf32>
    %108 = tpu.matmul %105, %72, %cst_50 {dimension_numbers = #tpu.dot_dimension_numbers<[1], [0], [0], [1], [0, 0, 1, 1], [], []>} : vector<16x16xf32>, vector<16x16xf32>, vector<16x16xf32> -> vector<16x16xf32>
    %109 = arith.addf %107, %108 : vector<16x16xf32>
    %110 = vector.broadcast %73 : vector<1x16xf32> to vector<16x16xf32>
    %111 = arith.addf %109, %110 : vector<16x16xf32>
    %cst_51 = arith.constant 0.000000e+00 : f32
    %112 = vector.broadcast %cst_51 : f32 to vector<16x16xf32>
    %113 = arith.maximumf %111, %112 : vector<16x16xf32>
    %114 = arith.addf %113, %63 : vector<16x16xf32>
    %cst_52 = arith.constant 0.000000e+00 : f32
    %115 = vector.broadcast %cst_52 : f32 to vector<16x16xf32>
    %116 = arith.maximumf %114, %115 : vector<16x16xf32>
    %c0_53 = arith.constant 0 : index
    %c144 = arith.constant 144 : index
    %c0_54 = arith.constant 0 : index
    %117 = vector.load %arg2[%c0_53, %c144, %c0_54] : memref<1x208x16xf32, #tpu.memory_space<vmem>>, vector<1x16x16xf32>
    %118 = vector.shape_cast %117 : vector<1x16x16xf32> to vector<16x16xf32>
    %c0_55 = arith.constant 0 : index
    %c160 = arith.constant 160 : index
    %c0_56 = arith.constant 0 : index
    %119 = vector.load %arg2[%c0_55, %c160, %c0_56] : memref<1x208x16xf32, #tpu.memory_space<vmem>>, vector<1x16x16xf32>
    %120 = vector.shape_cast %119 : vector<1x16x16xf32> to vector<16x16xf32>
    %121 = vector.extract_strided_slice %4 {offsets = [5, 0], sizes = [1, 16], strides = [1, 1]} : vector<8x16xf32> to vector<1x16xf32>
    %c0_57 = arith.constant 0 : index
    %c176 = arith.constant 176 : index
    %c0_58 = arith.constant 0 : index
    %122 = vector.load %arg2[%c0_57, %c176, %c0_58] : memref<1x208x16xf32, #tpu.memory_space<vmem>>, vector<1x16x16xf32>
    %123 = vector.shape_cast %122 : vector<1x16x16xf32> to vector<16x16xf32>
    %c0_59 = arith.constant 0 : index
    %c192 = arith.constant 192 : index
    %c0_60 = arith.constant 0 : index
    %124 = vector.load %arg2[%c0_59, %c192, %c0_60] : memref<1x208x16xf32, #tpu.memory_space<vmem>>, vector<1x16x16xf32>
    %125 = vector.shape_cast %124 : vector<1x16x16xf32> to vector<16x16xf32>
    %126 = vector.extract_strided_slice %4 {offsets = [6, 0], sizes = [1, 16], strides = [1, 1]} : vector<8x16xf32> to vector<1x16xf32>
    %127 = arith.subi %1, %2 : vector<16x16xi32>
    %c4_i32 = arith.constant 4 : i32
    %128 = vector.broadcast %c4_i32 : i32 to vector<16x16xi32>
    %129 = arith.cmpi eq, %127, %128 : vector<16x16xi32>
    %c8_i32_61 = arith.constant 8 : i32
    %c0_i32_62 = arith.constant 0 : i32
    %130 = arith.cmpi eq, %c8_i32_61, %c0_i32_62 : i32
    %c1_i32_63 = arith.constant 1 : i32
    %131 = arith.select %130, %c1_i32_63, %c8_i32_61 : i32
    %132 = vector.broadcast %131 : i32 to vector<16x16xi32>
    %133 = arith.remsi %1, %132 : vector<16x16xi32>
    %c0_i32_64 = arith.constant 0 : i32
    %134 = vector.broadcast %c0_i32_64 : i32 to vector<16x16xi32>
    %135 = arith.cmpi ne, %133, %134 : vector<16x16xi32>
    %c0_i32_65 = arith.constant 0 : i32
    %136 = vector.broadcast %c0_i32_65 : i32 to vector<16x16xi32>
    %137 = arith.cmpi slt, %133, %136 : vector<16x16xi32>
    %c0_i32_66 = arith.constant 0 : i32
    %138 = arith.cmpi slt, %131, %c0_i32_66 : i32
    %139 = vector.broadcast %138 : i1 to vector<16x16xi1>
    %140 = vector.broadcast %139 : vector<16x16xi1> to vector<16x16xi1>
    %141 = arith.xori %137, %140 : vector<16x16xi1>
    %142 = arith.andi %141, %135 : vector<16x16xi1>
    %143 = vector.broadcast %131 : i32 to vector<16x16xi32>
    %144 = arith.addi %133, %143 : vector<16x16xi32>
    %145 = arith.select %142, %144, %133 : vector<16x16xi1>, vector<16x16xi32>
    %c4_i32_67 = arith.constant 4 : i32
    %146 = vector.broadcast %c4_i32_67 : i32 to vector<16x16xi32>
    %147 = arith.cmpi sge, %145, %146 : vector<16x16xi32>
    %148 = arith.andi %129, %147 : vector<16x16xi1>
    %149 = arith.extui %148 : vector<16x16xi1> to vector<16x16xi32>
    %150 = arith.sitofp %149 : vector<16x16xi32> to vector<16x16xf32>
    %cst_68 = arith.constant dense<0.000000e+00> : vector<16x16xf32>
    %151 = tpu.matmul %116, %118, %cst_68 {dimension_numbers = #tpu.dot_dimension_numbers<[1], [0], [0], [1], [0, 0, 1, 1], [], []>} : vector<16x16xf32>, vector<16x16xf32>, vector<16x16xf32> -> vector<16x16xf32>
    %cst_69 = arith.constant dense<0.000000e+00> : vector<16x16xf32>
    %152 = tpu.matmul %150, %151, %cst_69 {dimension_numbers = #tpu.dot_dimension_numbers<[1], [0], [0], [1], [0, 0, 1, 1], [], []>} : vector<16x16xf32>, vector<16x16xf32>, vector<16x16xf32> -> vector<16x16xf32>
    %cst_70 = arith.constant dense<0.000000e+00> : vector<16x16xf32>
    %153 = tpu.matmul %116, %120, %cst_70 {dimension_numbers = #tpu.dot_dimension_numbers<[1], [0], [0], [1], [0, 0, 1, 1], [], []>} : vector<16x16xf32>, vector<16x16xf32>, vector<16x16xf32> -> vector<16x16xf32>
    %154 = arith.addf %152, %153 : vector<16x16xf32>
    %155 = vector.broadcast %121 : vector<1x16xf32> to vector<16x16xf32>
    %156 = arith.addf %154, %155 : vector<16x16xf32>
    %cst_71 = arith.constant 0.000000e+00 : f32
    %157 = vector.broadcast %cst_71 : f32 to vector<16x16xf32>
    %158 = arith.maximumf %156, %157 : vector<16x16xf32>
    %cst_72 = arith.constant dense<0.000000e+00> : vector<16x16xf32>
    %159 = tpu.matmul %158, %123, %cst_72 {dimension_numbers = #tpu.dot_dimension_numbers<[1], [0], [0], [1], [0, 0, 1, 1], [], []>} : vector<16x16xf32>, vector<16x16xf32>, vector<16x16xf32> -> vector<16x16xf32>
    %cst_73 = arith.constant dense<0.000000e+00> : vector<16x16xf32>
    %160 = tpu.matmul %150, %159, %cst_73 {dimension_numbers = #tpu.dot_dimension_numbers<[1], [0], [0], [1], [0, 0, 1, 1], [], []>} : vector<16x16xf32>, vector<16x16xf32>, vector<16x16xf32> -> vector<16x16xf32>
    %cst_74 = arith.constant dense<0.000000e+00> : vector<16x16xf32>
    %161 = tpu.matmul %158, %125, %cst_74 {dimension_numbers = #tpu.dot_dimension_numbers<[1], [0], [0], [1], [0, 0, 1, 1], [], []>} : vector<16x16xf32>, vector<16x16xf32>, vector<16x16xf32> -> vector<16x16xf32>
    %162 = arith.addf %160, %161 : vector<16x16xf32>
    %163 = vector.broadcast %126 : vector<1x16xf32> to vector<16x16xf32>
    %164 = arith.addf %162, %163 : vector<16x16xf32>
    %cst_75 = arith.constant 0.000000e+00 : f32
    %165 = vector.broadcast %cst_75 : f32 to vector<16x16xf32>
    %166 = arith.maximumf %164, %165 : vector<16x16xf32>
    %167 = arith.addf %166, %116 : vector<16x16xf32>
    %cst_76 = arith.constant 0.000000e+00 : f32
    %168 = vector.broadcast %cst_76 : f32 to vector<16x16xf32>
    %169 = arith.maximumf %167, %168 : vector<16x16xf32>
    %170 = tpu.iota {dimensions = array<i32: 0>} : vector<2x16xi32>
    %171 = tpu.iota {dimensions = array<i32: 1>} : vector<2x16xi32>
    %c8_i32_77 = arith.constant 8 : i32
    %172 = vector.broadcast %c8_i32_77 : i32 to vector<2x16xi32>
    %173 = arith.muli %170, %172 : vector<2x16xi32>
    %c7_i32 = arith.constant 7 : i32
    %174 = vector.broadcast %c7_i32 : i32 to vector<2x16xi32>
    %175 = arith.addi %173, %174 : vector<2x16xi32>
    %176 = arith.cmpi eq, %171, %175 : vector<2x16xi32>
    %177 = arith.extui %176 : vector<2x16xi1> to vector<2x16xi32>
    %178 = arith.sitofp %177 : vector<2x16xi32> to vector<2x16xf32>
    %cst_78 = arith.constant dense<0.000000e+00> : vector<2x8xf32>
    %179 = tpu.matmul %178, %0, %cst_78 {dimension_numbers = #tpu.dot_dimension_numbers<[1], [0], [0], [1], [0, 0, 1, 1], [], []>} : vector<2x16xf32>, vector<16x8xf32>, vector<2x8xf32> -> vector<2x8xf32>
    %cst_79 = arith.constant dense<0.000000e+00> : vector<2x16xf32>
    %180 = tpu.matmul %178, %169, %cst_79 {dimension_numbers = #tpu.dot_dimension_numbers<[1], [0], [0], [1], [0, 0, 1, 1], [], []>} : vector<2x16xf32>, vector<16x16xf32>, vector<2x16xf32> -> vector<2x16xf32>
    %c0_80 = arith.constant 0 : index
    %c0_81 = arith.constant 0 : index
    %c0_82 = arith.constant 0 : index
    %181 = vector.load %arg4[%c0_80, %c0_81, %c0_82] : memref<1x104x64xf32, #tpu.memory_space<vmem>>, vector<1x8x64xf32>
    %182 = vector.shape_cast %181 : vector<1x8x64xf32> to vector<8x64xf32>
    %c0_83 = arith.constant 0 : index
    %c16_84 = arith.constant 16 : index
    %c0_85 = arith.constant 0 : index
    %183 = vector.load %arg4[%c0_83, %c16_84, %c0_85] : memref<1x104x64xf32, #tpu.memory_space<vmem>>, vector<1x64x64xf32>
    %184 = vector.shape_cast %183 : vector<1x64x64xf32> to vector<64x64xf32>
    %c0_86 = arith.constant 0 : index
    %c80_87 = arith.constant 80 : index
    %c0_88 = arith.constant 0 : index
    %185 = vector.load %arg4[%c0_86, %c80_87, %c0_88] : memref<1x104x64xf32, #tpu.memory_space<vmem>>, vector<1x16x64xf32>
    %186 = vector.shape_cast %185 : vector<1x16x64xf32> to vector<16x64xf32>
    %c0_89 = arith.constant 0 : index
    %c96_90 = arith.constant 96 : index
    %c0_91 = arith.constant 0 : index
    %187 = vector.load %arg4[%c0_89, %c96_90, %c0_91] : memref<1x104x64xf32, #tpu.memory_space<vmem>>, vector<1x1x64xf32>
    %188 = vector.shape_cast %187 : vector<1x1x64xf32> to vector<1x64xf32>
    %c0_92 = arith.constant 0 : index
    %c97 = arith.constant 97 : index
    %c0_93 = arith.constant 0 : index
    %189 = vector.load %arg4[%c0_92, %c97, %c0_93] : memref<1x104x64xf32, #tpu.memory_space<vmem>>, vector<1x1x64xf32>
    %190 = vector.shape_cast %189 : vector<1x1x64xf32> to vector<1x64xf32>
    %cst_94 = arith.constant dense<0.000000e+00> : vector<2x64xf32>
    %191 = tpu.matmul %179, %182, %cst_94 {dimension_numbers = #tpu.dot_dimension_numbers<[1], [0], [0], [1], [0, 0, 1, 1], [], []>} : vector<2x8xf32>, vector<8x64xf32>, vector<2x64xf32> -> vector<2x64xf32>
    %192 = vector.broadcast %188 : vector<1x64xf32> to vector<2x64xf32>
    %193 = arith.addf %191, %192 : vector<2x64xf32>
    %cst_95 = arith.constant 0.000000e+00 : f32
    %194 = vector.broadcast %cst_95 : f32 to vector<2x64xf32>
    %195 = arith.maximumf %193, %194 : vector<2x64xf32>
    %cst_96 = arith.constant dense<0.000000e+00> : vector<2x64xf32>
    %196 = tpu.matmul %195, %184, %cst_96 {dimension_numbers = #tpu.dot_dimension_numbers<[1], [0], [0], [1], [0, 0, 1, 1], [], []>} : vector<2x64xf32>, vector<64x64xf32>, vector<2x64xf32> -> vector<2x64xf32>
    %cst_97 = arith.constant dense<0.000000e+00> : vector<2x64xf32>
    %197 = tpu.matmul %180, %186, %cst_97 {dimension_numbers = #tpu.dot_dimension_numbers<[1], [0], [0], [1], [0, 0, 1, 1], [], []>} : vector<2x16xf32>, vector<16x64xf32>, vector<2x64xf32> -> vector<2x64xf32>
    %198 = arith.addf %196, %197 : vector<2x64xf32>
    %199 = vector.broadcast %190 : vector<1x64xf32> to vector<2x64xf32>
    %200 = arith.addf %198, %199 : vector<2x64xf32>
    %cst_98 = arith.constant 0.000000e+00 : f32
    %201 = vector.broadcast %cst_98 : f32 to vector<2x64xf32>
    %202 = arith.maximumf %200, %201 : vector<2x64xf32>
    %c0_99 = arith.constant 0 : index
    %c0_100 = arith.constant 0 : index
    %c0_101 = arith.constant 0 : index
    %203 = vector.load %arg5[%c0_99, %c0_100, %c0_101] : memref<1x2x64xf32, #tpu.memory_space<vmem>>, vector<1x2x64xf32>
    %204 = vector.shape_cast %203 : vector<1x2x64xf32> to vector<2x64xf32>
    %205 = vector.shape_cast %202 : vector<2x64xf32> to vector<1x2x64xf32>
    tpu.vector_store %arg5[%c0_99, %c0_100, %c0_101], %205 {strides = array<i32>} : memref<1x2x64xf32, #tpu.memory_space<vmem>>, vector<1x2x64xf32>,
    return
  }
  func.func @transform_0(%arg0: i32) -> (i32, i32) {
    %c0_i32 = arith.constant 0 : i32
    %c0_i32_0 = arith.constant 0 : i32
    %c0_i32_1 = arith.constant 0 : i32
    return %c0_i32, %c0_i32_0 : i32, i32
  }
  func.func @transform_1(%arg0: i32) -> (i32, i32, i32) {
    %c0_i32 = arith.constant 0 : i32
    %c0_i32_0 = arith.constant 0 : i32
    %c0_i32_1 = arith.constant 0 : i32
    return %arg0, %c0_i32, %c0_i32_0 : i32, i32, i32
  }
  func.func @transform_2(%arg0: i32) -> (i32, i32, i32) {
    %c0_i32 = arith.constant 0 : i32
    %c0_i32_0 = arith.constant 0 : i32
    %c0_i32_1 = arith.constant 0 : i32
    return %arg0, %c0_i32, %c0_i32_0 : i32, i32, i32
  }
  func.func @transform_3(%arg0: i32) -> (i32, i32, i32) {
    %c0_i32 = arith.constant 0 : i32
    %c0_i32_0 = arith.constant 0 : i32
    %c0_i32_1 = arith.constant 0 : i32
    return %arg0, %c0_i32, %c0_i32_0 : i32, i32, i32
  }
  func.func @transform_4(%arg0: i32) -> (i32, i32, i32) {
    %c0_i32 = arith.constant 0 : i32
    %c0_i32_0 = arith.constant 0 : i32
    %c0_i32_1 = arith.constant 0 : i32
    return %arg0, %c0_i32, %c0_i32_0 : i32, i32, i32
  }
}

</mosaic_0001>

<llo_original>
// kernel: custom_network_forward.1
$region0: #{custom_network_forward.1}
  #allocation0 [shape = 'u32[]', space=smem, size = 0x4, offset = 0x4, fixed_abs, tag = 'smem constant byte address 0x4 - core index']
  #allocation1 [shape = 'u32[144,128]{1,0:T(1,128)}', space=vmem, size = 0x12000, scoped, tag = 'internal scratch']
  %s0 = inlined_call_operand.vmem [shape: f32[16,8], index: 0, kind: input, shape index: {}]
  %s1 = inlined_call_operand.vmem [shape: f32[2,208,16], index: 1, kind: input, shape index: {}]
  %s2 = inlined_call_operand.vmem [shape: f32[2,8,16], index: 2, kind: input, shape index: {}]
  %s3 = inlined_call_operand.vmem [shape: f32[2,104,64], index: 3, kind: input, shape index: {}]
  %s4 = inlined_call_operand.vmem [shape: f32[2,2,64], index: 4, kind: output, shape index: {}]
  %s5 = sld [smem:[#allocation0]]
  $region49: #{custom_network_forward.1} parent=0
    _
  %s7 = ssub.s32 1, %s5
  %s8 = scalar_select 0, %s7, %s5
  loop: start=0, step=1, limit=4
  $region2: #{custom_network_forward.1} parent=0 // loop_pre_header
    _
  $region3: #{custom_network_forward.1} parent=0 // loop_header
    %s10 = sphi 0, %s14
    %p11 = scmp.ge.s32.totalorder %s10, 4
    %s18 = sphi 0, %s18
    %s20 = sphi 0, %s18
    %s21 = sphi 0, %s20
    %s35 = sphi 0, %s21
    %s41 = sphi 0, %s43
    %s44 = sphi 0, %s41
    %s45 = sphi 0, %s44
    %s61 = sphi 0, %s45
    %s67 = sphi 0, %s69
    %s70 = sphi 0, %s67
    %s71 = sphi 0, %s70
    %s87 = sphi 0, %s71
    %s93 = sphi 0, %s95
    %s96 = sphi 0, %s93
    %s97 = sphi 0, %s96
    %s113 = sphi 0, %s97
    %s119 = sphi 0, %s121
    %s122 = sphi 0, %s119
    %s123 = sphi 0, %s122
    %s139 = sphi 0, %s123
  $region4: #{custom_network_forward.1} parent=0 // loop_header_branch
    %13 = sbr.rel (%p11) target = $region8
  $region5: #{custom_network_forward.1} parent=0 // loop_body
    %s15 = ssub.s32 %s10, 1
    %s16 = ssub.s32 %s10, 2
    %s17 = sadd.s32 %s10, 1
    %s19 = sadd.s32 %s18, 1
    %p22 = scmp.eq.s32.totalorder %s10, 1
    %p23 = scmp.ne.s32.totalorder %s18, %s20
    %p24 = scmp.eq.s32.totalorder %s10, 0
    %p25 = por %p23, %p24
    %p26 = scmp.ne.s32.totalorder %s18, %s20
    %p27 = scmp.eq.s32.totalorder %s15, 1
    %p28 = por %p26, %p27
    %p29 = scmp.ne.s32.totalorder %s20, %s21
    %p30 = scmp.eq.s32.totalorder %s15, 0
    %p31 = por %p29, %p30
    %p32 = scmp.ne.s32.totalorder %s20, %s21
    %p33 = scmp.eq.s32.totalorder %s16, 1
    %p34 = por %p32, %p33
    %p36 = scmp.ne.s32.totalorder %s21, %s35
    %p37 = scmp.eq.s32.totalorder %s16, 0
    %p38 = por %p36, %p37
    %s39 = ssub.s32 %s10, %s17
    %p40 = scmp.eq.s32.totalorder %s39, 0
    %s42 = sadd.s32 %s41, 1
    %s43 = scalar_select %p40, %s41, %s42
    %p46 = pneg %p40
    %p47 = scmp.eq.s32.totalorder %s10, 1
    %p48 = por %p46, %p47
    %p49 = scmp.ne.s32.totalorder %s41, %s44
    %p50 = scmp.eq.s32.totalorder %s10, 0
    %p51 = por %p49, %p50
    %p52 = scmp.ne.s32.totalorder %s41, %s44
    %p53 = scmp.eq.s32.totalorder %s15, 1
    %p54 = por %p52, %p53
    %p55 = scmp.ne.s32.totalorder %s44, %s45
    %p56 = scmp.eq.s32.totalorder %s15, 0
    %p57 = por %p55, %p56
    %p58 = scmp.ne.s32.totalorder %s44, %s45
    %p59 = scmp.eq.s32.totalorder %s16, 1
    %p60 = por %p58, %p59
    %p62 = scmp.ne.s32.totalorder %s45, %s61
    %p63 = scmp.eq.s32.totalorder %s16, 0
    %p64 = por %p62, %p63
    %s65 = ssub.s32 %s10, %s17
    %p66 = scmp.eq.s32.totalorder %s65, 0
    %s68 = sadd.s32 %s67, 1
    %s69 = scalar_select %p66, %s67, %s68
    %p72 = pneg %p66
    %p73 = scmp.eq.s32.totalorder %s10, 1
    %p74 = por %p72, %p73
    %p75 = scmp.ne.s32.totalorder %s67, %s70
    %p76 = scmp.eq.s32.totalorder %s10, 0
    %p77 = por %p75, %p76
    %p78 = scmp.ne.s32.totalorder %s67, %s70
    %p79 = scmp.eq.s32.totalorder %s15, 1
    %p80 = por %p78, %p79
    %p81 = scmp.ne.s32.totalorder %s70, %s71
    %p82 = scmp.eq.s32.totalorder %s15, 0
    %p83 = por %p81, %p82
    %p84 = scmp.ne.s32.totalorder %s70, %s71
    %p85 = scmp.eq.s32.totalorder %s16, 1
    %p86 = por %p84, %p85
    %p88 = scmp.ne.s32.totalorder %s71, %s87
    %p89 = scmp.eq.s32.totalorder %s16, 0
    %p90 = por %p88, %p89
    %s91 = ssub.s32 %s10, %s17
    %p92 = scmp.eq.s32.totalorder %s91, 0
    %s94 = sadd.s32 %s93, 1
    %s95 = scalar_select %p92, %s93, %s94
    %p98 = pneg %p92
    %p99 = scmp.eq.s32.totalorder %s10, 1
    %p100 = por %p98, %p99
    %p101 = scmp.ne.s32.totalorder %s93, %s96
    %p102 = scmp.eq.s32.totalorder %s10, 0
    %p103 = por %p101, %p102
    %p104 = scmp.ne.s32.totalorder %s93, %s96
    %p105 = scmp.eq.s32.totalorder %s15, 1
    %p106 = por %p104, %p105
    %p107 = scmp.ne.s32.totalorder %s96, %s97
    %p108 = scmp.eq.s32.totalorder %s15, 0
    %p109 = por %p107, %p108
    %p110 = scmp.ne.s32.totalorder %s96, %s97
    %p111 = scmp.eq.s32.totalorder %s16, 1
    %p112 = por %p110, %p111
    %p114 = scmp.ne.s32.totalorder %s97, %s113
    %p115 = scmp.eq.s32.totalorder %s16, 0
    %p116 = por %p114, %p115
    %s117 = ssub.s32 %s10, %s17
    %p118 = scmp.eq.s32.totalorder %s117, 0
    %s120 = sadd.s32 %s119, 1
    %s121 = scalar_select %p118, %s119, %s120
    %p124 = pneg %p118
    %p125 = scmp.eq.s32.totalorder %s10, 1
    %p126 = por %p124, %p125
    %p127 = scmp.ne.s32.totalorder %s119, %s122
    %p128 = scmp.eq.s32.totalorder %s10, 0
    %p129 = por %p127, %p128
    %p130 = scmp.ne.s32.totalorder %s119, %s122
    %p131 = scmp.eq.s32.totalorder %s15, 1
    %p132 = por %p130, %p131
    %p133 = scmp.ne.s32.totalorder %s122, %s123
    %p134 = scmp.eq.s32.totalorder %s15, 0
    %p135 = por %p133, %p134
    %p136 = scmp.ne.s32.totalorder %s122, %s123
    %p137 = scmp.eq.s32.totalorder %s16, 1
    %p138 = por %p136, %p137
    %p140 = scmp.ne.s32.totalorder %s123, %s139
    %p141 = scmp.eq.s32.totalorder %s16, 0
    %p142 = por %p140, %p141
    %p143 = scmp.le.s32.totalorder 1, %s10
    %p144 = scmp.lt.s32.totalorder %s10, 3
    %p145 = pnand %p143, %p144
    %p146 = pneg %p145
    // Predicated region
    $region9: #{custom_network_forward.1} parent=5 // pred_check
      _
    $region10: #{custom_network_forward.1} parent=5 // pred_check_branch
      %148 = sbr.rel (%p145) target = $region12
    $region11: #{custom_network_forward.1} parent=5 // pred_region
      %s149 = ssub.s32 %s10, 1
      // Predicated region
      $region13: #{custom_network_forward.1} parent=11 // pred_check
        %p150 = pneg %p31
      $region14: #{custom_network_forward.1} parent=11 // pred_check_branch
        %152 = sbr.rel (%p150) target = $region16
      $region15: #{custom_network_forward.1} parent=11 // pred_region
        _
      $region16: #{custom_network_forward.1} parent=11 // pred_fallthru
        _
    $region12: #{custom_network_forward.1} parent=5 // pred_fallthru
      _
    %p153 = scmp.lt.s32.totalorder %s10, 2
    // Predicated region
    $region17: #{custom_network_forward.1} parent=5 // pred_check
      %p154 = pneg %p153
    $region18: #{custom_network_forward.1} parent=5 // pred_check_branch
      %156 = sbr.rel (%p154) target = $region20
    $region19: #{custom_network_forward.1} parent=5 // pred_region
      // Predicated region
      $region21: #{custom_network_forward.1} parent=19 // pred_check
        %p157 = pneg %p51
      $region22: #{custom_network_forward.1} parent=19 // pred_check_branch
        %159 = sbr.rel (%p157) target = $region24
      $region23: #{custom_network_forward.1} parent=19 // pred_region
        %p160 = scmp.lt.s32.totalorder %s10, 1
        %s161 = scalar_select %p160, %s10, 1
        %s162 = smul.addr %s161, 26
        %s163 = smul.addr %s162, 8
        %s164 = scalar_lea.vmem %s1, %s163
      $region24: #{custom_network_forward.1} parent=19 // pred_fallthru
        _
      // Predicated region
      $region25: #{custom_network_forward.1} parent=19 // pred_check
        %p165 = pneg %p77
      $region26: #{custom_network_forward.1} parent=19 // pred_check_branch
        %167 = sbr.rel (%p165) target = $region28
      $region27: #{custom_network_forward.1} parent=19 // pred_region
        %p168 = scmp.lt.s32.totalorder %s10, 1
        %s169 = scalar_select %p168, %s10, 1
        %s170 = smul.addr %s169, 8
        %s171 = scalar_lea.vmem %s2, %s170
      $region28: #{custom_network_forward.1} parent=19 // pred_fallthru
        _
      // Predicated region
      $region29: #{custom_network_forward.1} parent=19 // pred_check
        %p172 = pneg %p103
      $region30: #{custom_network_forward.1} parent=19 // pred_check_branch
        %174 = sbr.rel (%p172) target = $region32
      $region31: #{custom_network_forward.1} parent=19 // pred_region
        %p175 = scmp.lt.s32.totalorder %s10, 1
        %s176 = scalar_select %p175, %s10, 1
        %s177 = smul.addr %s176, 13
        %s178 = smul.addr %s177, 8
        %s179 = scalar_lea.vmem %s3, %s178
      $region32: #{custom_network_forward.1} parent=19 // pred_fallthru
        _
    $region20: #{custom_network_forward.1} parent=5 // pred_fallthru
      _
    %p180 = scmp.le.s32.totalorder 1, %s10
    %p181 = scmp.lt.s32.totalorder %s10, 3
    %p182 = pnand %p180, %p181
    %p183 = pneg %p182
    // Predicated region
    $region33: #{custom_network_forward.1} parent=5 // pred_check
      _
    $region34: #{custom_network_forward.1} parent=5 // pred_check_branch
      %185 = sbr.rel (%p182) target = $region36
    $region35: #{custom_network_forward.1} parent=5 // pred_region
      %s186 = ssub.s32 %s10, 1
      %p187 = pneg %p31
      %p188 = pneg %p28
      %p189 = scmp.lt.s32.totalorder %s15, 1
      %s190 = scalar_select %p189, %s15, 1
      %s191 = smul.addr %s190, 26
      %s192 = smul.addr %s191, 8
      %s193 = scalar_lea.vmem %s1, %s192
      %p194 = pneg %p57
      %p195 = pneg %p54
      %p196 = scmp.lt.s32.totalorder %s15, 1
      %s197 = scalar_select %p196, %s15, 1
      %s198 = smul.addr %s197, 8
      %s199 = scalar_lea.vmem %s2, %s198
      %p200 = pneg %p83
      %p201 = pneg %p80
      %p202 = scmp.lt.s32.totalorder %s15, 1
      %s203 = scalar_select %p202, %s15, 1
      %s204 = smul.addr %s203, 13
      %s205 = smul.addr %s204, 8
      %s206 = scalar_lea.vmem %s3, %s205
      %p207 = pneg %p109
      %p208 = pneg %p106
      %p209 = pneg %p135
      %p210 = pneg %p132
      %p211 = scmp.lt.s32.totalorder %s15, 1
      %s212 = scalar_select %p211, %s15, 1
      %s213 = smul.addr %s212, 2
      %s214 = scalar_lea.vmem %s4, %s213
      %p215 = scmp.lt.s32.totalorder %s15, 1
      %s216 = scalar_select %p215, %s15, 1
      %s217 = smul.addr %s216, 26
      %s218 = smul.addr %s217, 8
      %s219 = scalar_lea.vmem %s1, %s218
      %p220 = scmp.lt.s32.totalorder %s15, 1
      %s221 = scalar_select %p220, %s15, 1
      %s222 = smul.addr %s221, 8
      %s223 = scalar_lea.vmem %s2, %s222
      %p224 = scmp.lt.s32.totalorder %s15, 1
      %s225 = scalar_select %p224, %s15, 1
      %s226 = smul.addr %s225, 13
      %s227 = smul.addr %s226, 8
      %s228 = scalar_lea.vmem %s3, %s227
      %p229 = scmp.lt.s32.totalorder %s15, 1
      %s230 = scalar_select %p229, %s15, 1
      %s231 = smul.addr %s230, 2
      %s232 = scalar_lea.vmem %s4, %s231
      %v233 = vld [vmem:[%s0] sm:$0xff]
      %v234 = vld [vmem:[%s0 + $0x8] sm:$0xff]
      %v235 = vlaneseq
      %v236 = vshrl.u32 %v235, 7
      %v237 = vadd.s32 %v236, 8
      %v238 = vlaneseq
      %v239 = vand.u32 %v238, 127
      %v240 = vld [vmem:[%s223] sm:$0xff]
      %v241 = vld [vmem:[%s219 + $0x40] sm:$0xff]
      %v242 = vlaneseq
      %v243 = vshrl.u32 %v242, 7
      %v244 = vsub.s32 2, %v243
      %v245 = vrot.slane %v240, %v244
      %vm246 = vcmask 64512
      %v248 = vsel %vm246, %v233, 0
      %v251 = vsel %vm246, %v234, 0
      %253 = vmatprep.subr.mxu0 0.0
      %254 = vmatpush1.msra.mxu0 %v241
      %255 = vmatprep.subr.mxu0 0.0
      %256 = vmatpush1.msra.mxu0 0.0
      %257 = vmatprep.subr.mxu0 0.0
      %258 = vmatpush1.msra.mxu0 0.0
      %259 = vmatprep.subr.mxu0 0.0
      %260 = vmatpush1.msra.mxu0 0.0
      %261 = vmatprep.subr.mxu0 0.0
      %262 = vmatpush1.msra.mxu0 0.0
      %263 = vmatprep.subr.mxu0 0.0
      %264 = vmatpush1.msra.mxu0 0.0
      %265 = vmatprep.subr.mxu0 0.0
      %266 = vmatpush1.msra.mxu0 0.0
      %267 = vmatprep.subr.mxu0 0.0
      %268 = vmatpush1.msra.mxu0 0.0
      %269 = vmatprep.subr.mxu0 0.0
      %270 = vmatpush1.msra.mxu0 0.0
      %271 = vmatprep.subr.mxu0 0.0
      %272 = vmatpush1.msra.mxu0 0.0
      %273 = vmatprep.subr.mxu0 0.0
      %274 = vmatpush1.msra.mxu0 0.0
      %275 = vmatprep.subr.mxu0 0.0
      %276 = vmatpush1.msra.mxu0 0.0
      %277 = vmatprep.subr.mxu0 0.0
      %278 = vmatpush1.msra.mxu0 0.0
      %279 = vmatprep.subr.mxu0 0.0
      %280 = vmatpush1.msra.mxu0 0.0
      %281 = vmatprep.subr.mxu0 0.0
      %282 = vmatpush1.msra.mxu0 0.0
      %283 = vmatprep.subr.mxu0 0.0
      %284 = vmatpush1.msra.mxu0 0.0
      %285 = vmatprep.subr.mxu0 0.0
      %286 = vmatpush1.msra.mxu0 0.0
      %287 = vmatprep.subr.mxu0 0.0
      %288 = vmatpush1.msra.mxu0 0.0
      %289 = vmatprep.subr.mxu0 0.0
      %290 = vmatpush1.msra.mxu0 0.0
      %291 = vmatprep.subr.mxu0 0.0
      %292 = vmatpush1.msra.mxu0 0.0
      %293 = vmatprep.subr.mxu0 0.0
      %294 = vmatpush1.msra.mxu0 0.0
      %295 = vmatprep.subr.mxu0 0.0
      %296 = vmatpush1.msra.mxu0 0.0
      %297 = vmatprep.subr.mxu0 0.0
      %298 = vmatpush1.msra.mxu0 0.0
      %299 = vmatprep.subr.mxu0 0.0
      %300 = vmatpush1.msra.mxu0 0.0
      %301 = vmatprep.subr.mxu0 0.0
      %302 = vmatpush1.msra.mxu0 0.0
      %303 = vmatprep.subr.mxu0 0.0
      %304 = vmatpush1.msra.mxu0 0.0
      %305 = vmatprep.subr.mxu0 0.0
      %306 = vmatpush1.msra.mxu0 0.0
      %307 = vmatprep.subr.mxu0 0.0
      %308 = vmatpush1.msra.mxu0 0.0
      %309 = vmatprep.subr.mxu0 0.0
      %310 = vmatpush1.msra.mxu0 0.0
      %311 = vmatprep.subr.mxu0 0.0
      %312 = vmatpush1.msra.mxu0 0.0
      %313 = vmatprep.subr.mxu0 0.0
      %314 = vmatpush1.msra.mxu0 0.0
      %315 = vmatprep.subr.mxu0 0.0
      %316 = vmatpush1.msra.mxu0 0.0
      %317 = vmatprep.mubr.f32.mxu0 0.0
      %318 = vmatmul.mubr.f32.gmra.mrb[0].mxu0 %v248
      %v319 = vpop.f32.mrb[0].mxu0
      %v320 = vadd.f32 %v245, %v319
      %v321 = vpop.f32.mrb[0].mxu0
      %322 = vmatprep.mubr.f32.mxu0 0.0
      %323 = vmatmul.mubr.f32.gmra.mrb[0].mxu0 %v251
      %v324 = vpop.f32.mrb[0].mxu0
      %v325 = vadd.f32 %v245, %v324
      %v326 = vpop.f32.mrb[0].mxu0
      %327 = vdwg.mxu0
      %v328 = vld [vmem:[%s219] sm:$0xff]
      %v329 = vld [vmem:[%s219 + $0x10] sm:$0xff]
      %v330 = vld [vmem:[%s219 + $0x20] sm:$0xff]
      %v331 = vld [vmem:[%s219 + $0x28] sm:$0xff]
      %v332 = vld [vmem:[%s219 + $0x30] sm:$0xff]
      %v333 = vld [vmem:[%s219 + $0x38] sm:$0xff]
      %v334 = vsub.s32 %v236, %v239
      %v335 = vsub.s32 %v237, %v239
      %vm336 = vcmp.eq.s32.totalorder %v334, 1
      %vm337 = vcmp.eq.s32.totalorder %v335, 1
      %vm338 = vcmp.lt.s32.totalorder %v236, 0
      %v339 = vsub.s32 0, %v236
      %v340 = vsel %vm338, %v339, %v236
      %v341 = vshrl.u32 %v340, 3
      %v342 = vand.u32 %v340, 7
      %v343 = vsub.s32 0, %v342
      %v344 = vsel %vm338, %v343, %v342
      %vm345 = vcmp.lt.s32.totalorder %v237, 0
      %v346 = vsub.s32 0, %v237
      %v347 = vsel %vm345, %v346, %v237
      %v348 = vshrl.u32 %v347, 3
      %v349 = vand.u32 %v347, 7
      %v350 = vsub.s32 0, %v349
      %v351 = vsel %vm345, %v350, %v349
      %vm352 = vcmp.ne.s32.totalorder %v344, 0
      %vm353 = vcmp.ne.s32.totalorder %v351, 0
      %vm354 = vcmp.lt.s32.totalorder %v344, 0
      %vm355 = vcmp.lt.s32.totalorder %v351, 0
      %vm356 = vmand %vm354, %vm352
      %vm357 = vmand %vm355, %vm353
      %v358 = vadd.s32 %v344, 8
      %v359 = vadd.s32 %v351, 8
      %v360 = vsel %vm356, %v358, %v344
      %v361 = vsel %vm357, %v359, %v351
      %vm362 = vcmp.ge.s32.totalorder %v360, 1
      %vm363 = vcmp.ge.s32.totalorder %v361, 1
      %vm364 = vmand %vm336, %vm362
      %vm365 = vmand %vm337, %vm363
      %v366 = vsel %vm364, 1, 0
      %v367 = vsel %vm365, 1, 0
      %v368 = vcvt.s32.f32 %v366
      %v369 = vcvt.s32.f32 %v367
      %370 = vmatprep.subr.mxu0 0.0
      %371 = vmatpush1.msra.mxu0 %v328
      %372 = vmatprep.subr.mxu0 0.0
      %373 = vmatpush1.msra.mxu0 0.0
      %374 = vmatprep.subr.mxu0 0.0
      %375 = vmatpush1.msra.mxu0 0.0
      %376 = vmatprep.subr.mxu0 0.0
      %377 = vmatpush1.msra.mxu0 0.0
      %378 = vmatprep.subr.mxu0 0.0
      %379 = vmatpush1.msra.mxu0 0.0
      %380 = vmatprep.subr.mxu0 0.0
      %381 = vmatpush1.msra.mxu0 0.0
      %382 = vmatprep.subr.mxu0 0.0
      %383 = vmatpush1.msra.mxu0 0.0
      %384 = vmatprep.subr.mxu0 0.0
      %385 = vmatpush1.msra.mxu0 0.0
      %386 = vmatprep.subr.mxu0 0.0
      %387 = vmatpush1.msra.mxu0 0.0
      %388 = vmatprep.subr.mxu0 0.0
      %389 = vmatpush1.msra.mxu0 0.0
      %390 = vmatprep.subr.mxu0 0.0
      %391 = vmatpush1.msra.mxu0 0.0
      %392 = vmatprep.subr.mxu0 0.0
      %393 = vmatpush1.msra.mxu0 0.0
      %394 = vmatprep.subr.mxu0 0.0
      %395 = vmatpush1.msra.mxu0 0.0
      %396 = vmatprep.subr.mxu0 0.0
      %397 = vmatpush1.msra.mxu0 0.0
      %398 = vmatprep.subr.mxu0 0.0
      %399 = vmatpush1.msra.mxu0 0.0
      %400 = vmatprep.subr.mxu0 0.0
      %401 = vmatpush1.msra.mxu0 0.0
      %402 = vmatprep.subr.mxu0 0.0
      %403 = vmatpush1.msra.mxu0 0.0
      %404 = vmatprep.subr.mxu0 0.0
      %405 = vmatpush1.msra.mxu0 0.0
      %406 = vmatprep.subr.mxu0 0.0
      %407 = vmatpush1.msra.mxu0 0.0
      %408 = vmatprep.subr.mxu0 0.0
      %409 = vmatpush1.msra.mxu0 0.0
      %410 = vmatprep.subr.mxu0 0.0
      %411 = vmatpush1.msra.mxu0 0.0
      %412 = vmatprep.subr.mxu0 0.0
      %413 = vmatpush1.msra.mxu0 0.0
      %414 = vmatprep.subr.mxu0 0.0
      %415 = vmatpush1.msra.mxu0 0.0
      %416 = vmatprep.subr.mxu0 0.0
      %417 = vmatpush1.msra.mxu0 0.0
      %418 = vmatprep.subr.mxu0 0.0
      %419 = vmatpush1.msra.mxu0 0.0
      %420 = vmatprep.subr.mxu0 0.0
      %421 = vmatpush1.msra.mxu0 0.0
      %422 = vmatprep.subr.mxu0 0.0
      %423 = vmatpush1.msra.mxu0 0.0
      %424 = vmatprep.subr.mxu0 0.0
      %425 = vmatpush1.msra.mxu0 0.0
      %426 = vmatprep.subr.mxu0 0.0
      %427 = vmatpush1.msra.mxu0 0.0
      %428 = vmatprep.subr.mxu0 0.0
      %429 = vmatpush1.msra.mxu0 0.0
      %430 = vmatprep.subr.mxu0 0.0
      %431 = vmatpush1.msra.mxu0 0.0
      %432 = vmatprep.subr.mxu0 0.0
      %433 = vmatpush1.msra.mxu0 0.0
      %434 = vmatprep.mubr.f32.mxu0 0.0
      %435 = vmatmul.mubr.f32.gmra.mrb[0].mxu0 %v248
      %v436 = vpop.f32.mrb[0].mxu0
      %v437 = vadd.f32 0.0, %v436
      %v438 = vpop.f32.mrb[0].mxu0
      %439 = vmatprep.mubr.f32.mxu0 0.0
      %440 = vmatmul.mubr.f32.gmra.mrb[0].mxu0 %v251
      %v441 = vpop.f32.mrb[0].mxu0
      %v442 = vadd.f32 0.0, %v441
      %v443 = vpop.f32.mrb[0].mxu0
      %444 = vdwg.mxu0
      %445 = vmatprep.subr.mxu0 0.0
      %446 = vmatpush1.msra.mxu0 %v329
      %447 = vmatprep.subr.mxu0 0.0
      %448 = vmatpush1.msra.mxu0 0.0
      %449 = vmatprep.subr.mxu0 0.0
      %450 = vmatpush1.msra.mxu0 0.0
      %451 = vmatprep.subr.mxu0 0.0
      %452 = vmatpush1.msra.mxu0 0.0
      %453 = vmatprep.subr.mxu0 0.0
      %454 = vmatpush1.msra.mxu0 0.0
      %455 = vmatprep.subr.mxu0 0.0
      %456 = vmatpush1.msra.mxu0 0.0
      %457 = vmatprep.subr.mxu0 0.0
      %458 = vmatpush1.msra.mxu0 0.0
      %459 = vmatprep.subr.mxu0 0.0
      %460 = vmatpush1.msra.mxu0 0.0
      %461 = vmatprep.subr.mxu0 0.0
      %462 = vmatpush1.msra.mxu0 0.0
      %463 = vmatprep.subr.mxu0 0.0
      %464 = vmatpush1.msra.mxu0 0.0
      %465 = vmatprep.subr.mxu0 0.0
      %466 = vmatpush1.msra.mxu0 0.0
      %467 = vmatprep.subr.mxu0 0.0
      %468 = vmatpush1.msra.mxu0 0.0
      %469 = vmatprep.subr.mxu0 0.0
      %470 = vmatpush1.msra.mxu0 0.0
      %471 = vmatprep.subr.mxu0 0.0
      %472 = vmatpush1.msra.mxu0 0.0
      %473 = vmatprep.subr.mxu0 0.0
      %474 = vmatpush1.msra.mxu0 0.0
      %475 = vmatprep.subr.mxu0 0.0
      %476 = vmatpush1.msra.mxu0 0.0
      %477 = vmatprep.subr.mxu0 0.0
      %478 = vmatpush1.msra.mxu0 0.0
      %479 = vmatprep.subr.mxu0 0.0
      %480 = vmatpush1.msra.mxu0 0.0
      %481 = vmatprep.subr.mxu0 0.0
      %482 = vmatpush1.msra.mxu0 0.0
      %483 = vmatprep.subr.mxu0 0.0
      %484 = vmatpush1.msra.mxu0 0.0
      %485 = vmatprep.subr.mxu0 0.0
      %486 = vmatpush1.msra.mxu0 0.0
      %487 = vmatprep.subr.mxu0 0.0
      %488 = vmatpush1.msra.mxu0 0.0
      %489 = vmatprep.subr.mxu0 0.0
      %490 = vmatpush1.msra.mxu0 0.0
      %491 = vmatprep.subr.mxu0 0.0
      %492 = vmatpush1.msra.mxu0 0.0
      %493 = vmatprep.subr.mxu0 0.0
      %494 = vmatpush1.msra.mxu0 0.0
      %495 = vmatprep.subr.mxu0 0.0
      %496 = vmatpush1.msra.mxu0 0.0
      %497 = vmatprep.subr.mxu0 0.0
      %498 = vmatpush1.msra.mxu0 0.0
      %499 = vmatprep.subr.mxu0 0.0
      %500 = vmatpush1.msra.mxu0 0.0
      %501 = vmatprep.subr.mxu0 0.0
      %502 = vmatpush1.msra.mxu0 0.0
      %503 = vmatprep.subr.mxu0 0.0
      %504 = vmatpush1.msra.mxu0 0.0
      %505 = vmatprep.subr.mxu0 0.0
      %506 = vmatpush1.msra.mxu0 0.0
      %507 = vmatprep.subr.mxu0 0.0
      %508 = vmatpush1.msra.mxu0 0.0
      %509 = vmatprep.mubr.f32.mxu0 0.0
      %510 = vmatmul.mubr.f32.gmra.mrb[0].mxu0 %v248
      %v511 = vpop.f32.mrb[0].mxu0
      %v512 = vadd.f32 0.0, %v511
      %v513 = vpop.f32.mrb[0].mxu0
      %514 = vmatprep.mubr.f32.mxu0 0.0
      %515 = vmatmul.mubr.f32.gmra.mrb[0].mxu0 %v251
      %v516 = vpop.f32.mrb[0].mxu0
      %v517 = vadd.f32 0.0, %v516
      %v518 = vpop.f32.mrb[0].mxu0
      %519 = vdwg.mxu0
      %vm520 = vcmask 130048
      %v522 = vsel %vm520, %v368, 0
      %v525 = vsel %vm520, %v369, 0
      %527 = vmatprep.subr.mxu0 0.0
      %528 = vmatpush1.msra.mxu0 %v437
      %529 = vmatprep.subr.mxu0 0.0
      %530 = vmatpush1.msra.mxu0 %v442
      %531 = vmatprep.subr.mxu0 0.0
      %532 = vmatpush1.msra.mxu0 0.0
      %533 = vmatprep.subr.mxu0 0.0
      %534 = vmatpush1.msra.mxu0 0.0
      %535 = vmatprep.subr.mxu0 0.0
      %536 = vmatpush1.msra.mxu0 0.0
      %537 = vmatprep.subr.mxu0 0.0
      %538 = vmatpush1.msra.mxu0 0.0
      %539 = vmatprep.subr.mxu0 0.0
      %540 = vmatpush1.msra.mxu0 0.0
      %541 = vmatprep.subr.mxu0 0.0
      %542 = vmatpush1.msra.mxu0 0.0
      %543 = vmatprep.subr.mxu0 0.0
      %544 = vmatpush1.msra.mxu0 0.0
      %545 = vmatprep.subr.mxu0 0.0
      %546 = vmatpush1.msra.mxu0 0.0
      %547 = vmatprep.subr.mxu0 0.0
      %548 = vmatpush1.msra.mxu0 0.0
      %549 = vmatprep.subr.mxu0 0.0
      %550 = vmatpush1.msra.mxu0 0.0
      %551 = vmatprep.subr.mxu0 0.0
      %552 = vmatpush1.msra.mxu0 0.0
      %553 = vmatprep.subr.mxu0 0.0
      %554 = vmatpush1.msra.mxu0 0.0
      %555 = vmatprep.subr.mxu0 0.0
      %556 = vmatpush1.msra.mxu0 0.0
      %557 = vmatprep.subr.mxu0 0.0
      %558 = vmatpush1.msra.mxu0 0.0
      %559 = vmatprep.subr.mxu0 0.0
      %560 = vmatpush1.msra.mxu0 0.0
      %561 = vmatprep.subr.mxu0 0.0
      %562 = vmatpush1.msra.mxu0 0.0
      %563 = vmatprep.subr.mxu0 0.0
      %564 = vmatpush1.msra.mxu0 0.0
      %565 = vmatprep.subr.mxu0 0.0
      %566 = vmatpush1.msra.mxu0 0.0
      %567 = vmatprep.subr.mxu0 0.0
      %568 = vmatpush1.msra.mxu0 0.0
      %569 = vmatprep.subr.mxu0 0.0
      %570 = vmatpush1.msra.mxu0 0.0
      %571 = vmatprep.subr.mxu0 0.0
      %572 = vmatpush1.msra.mxu0 0.0
      %573 = vmatprep.subr.mxu0 0.0
      %574 = vmatpush1.msra.mxu0 0.0
      %575 = vmatprep.subr.mxu0 0.0
      %576 = vmatpush1.msra.mxu0 0.0
      %577 = vmatprep.subr.mxu0 0.0
      %578 = vmatpush1.msra.mxu0 0.0
      %579 = vmatprep.subr.mxu0 0.0
      %580 = vmatpush1.msra.mxu0 0.0
      %581 = vmatprep.subr.mxu0 0.0
      %582 = vmatpush1.msra.mxu0 0.0
      %583 = vmatprep.subr.mxu0 0.0
      %584 = vmatpush1.msra.mxu0 0.0
      %585 = vmatprep.subr.mxu0 0.0
      %586 = vmatpush1.msra.mxu0 0.0
      %587 = vmatprep.subr.mxu0 0.0
      %588 = vmatpush1.msra.mxu0 0.0
      %589 = vmatprep.subr.mxu0 0.0
      %590 = vmatpush1.msra.mxu0 0.0
      %591 = vmatprep.mubr.f32.mxu0 0.0
      %592 = vmatmul.mubr.f32.gmra.mrb[0].mxu0 %v522
      %v593 = vpop.f32.mrb[0].mxu0
      %v594 = vadd.f32 %v512, %v593
      %v595 = vpop.f32.mrb[0].mxu0
      %596 = vmatprep.mubr.f32.mxu0 0.0
      %597 = vmatmul.mubr.f32.gmra.mrb[0].mxu0 %v525
      %v598 = vpop.f32.mrb[0].mxu0
      %v599 = vadd.f32 %v517, %v598
      %v600 = vpop.f32.mrb[0].mxu0
      %601 = vdwg.mxu0
      %v602 = vlaneseq
      %v603 = vshrl.u32 %v602, 7
      %v604 = vsub.s32 0, %v603
      %v605 = vrot.slane %v240, %v604
      %v606 = vadd.f32 %v594, %v605
      %v607 = vadd.f32 %v599, %v605
      %v608 = vmax.f32 %v606, 0.0
      %v609 = vmax.f32 %v607, 0.0
      %v611 = vsel %vm520, %v608, 0
      %v614 = vsel %vm520, %v609, 0
      %616 = vmatprep.subr.mxu0 0.0
      %617 = vmatpush1.msra.mxu0 %v330
      %618 = vmatprep.subr.mxu0 0.0
      %619 = vmatpush1.msra.mxu0 %v331
      %620 = vmatprep.subr.mxu0 0.0
      %621 = vmatpush1.msra.mxu0 0.0
      %622 = vmatprep.subr.mxu0 0.0
      %623 = vmatpush1.msra.mxu0 0.0
      %624 = vmatprep.subr.mxu0 0.0
      %625 = vmatpush1.msra.mxu0 0.0
      %626 = vmatprep.subr.mxu0 0.0
      %627 = vmatpush1.msra.mxu0 0.0
      %628 = vmatprep.subr.mxu0 0.0
      %629 = vmatpush1.msra.mxu0 0.0
      %630 = vmatprep.subr.mxu0 0.0
      %631 = vmatpush1.msra.mxu0 0.0
      %632 = vmatprep.subr.mxu0 0.0
      %633 = vmatpush1.msra.mxu0 0.0
      %634 = vmatprep.subr.mxu0 0.0
      %635 = vmatpush1.msra.mxu0 0.0
      %636 = vmatprep.subr.mxu0 0.0
      %637 = vmatpush1.msra.mxu0 0.0
      %638 = vmatprep.subr.mxu0 0.0
      %639 = vmatpush1.msra.mxu0 0.0
      %640 = vmatprep.subr.mxu0 0.0
      %641 = vmatpush1.msra.mxu0 0.0
      %642 = vmatprep.subr.mxu0 0.0
      %643 = vmatpush1.msra.mxu0 0.0
      %644 = vmatprep.subr.mxu0 0.0
      %645 = vmatpush1.msra.mxu0 0.0
      %646 = vmatprep.subr.mxu0 0.0
      %647 = vmatpush1.msra.mxu0 0.0
      %648 = vmatprep.subr.mxu0 0.0
      %649 = vmatpush1.msra.mxu0 0.0
      %650 = vmatprep.subr.mxu0 0.0
      %651 = vmatpush1.msra.mxu0 0.0
      %652 = vmatprep.subr.mxu0 0.0
      %653 = vmatpush1.msra.mxu0 0.0
      %654 = vmatprep.subr.mxu0 0.0
      %655 = vmatpush1.msra.mxu0 0.0
      %656 = vmatprep.subr.mxu0 0.0
      %657 = vmatpush1.msra.mxu0 0.0
      %658 = vmatprep.subr.mxu0 0.0
      %659 = vmatpush1.msra.mxu0 0.0
      %660 = vmatprep.subr.mxu0 0.0
      %661 = vmatpush1.msra.mxu0 0.0
      %662 = vmatprep.subr.mxu0 0.0
      %663 = vmatpush1.msra.mxu0 0.0
      %664 = vmatprep.subr.mxu0 0.0
      %665 = vmatpush1.msra.mxu0 0.0
      %666 = vmatprep.subr.mxu0 0.0
      %667 = vmatpush1.msra.mxu0 0.0
      %668 = vmatprep.subr.mxu0 0.0
      %669 = vmatpush1.msra.mxu0 0.0
      %670 = vmatprep.subr.mxu0 0.0
      %671 = vmatpush1.msra.mxu0 0.0
      %672 = vmatprep.subr.mxu0 0.0
      %673 = vmatpush1.msra.mxu0 0.0
      %674 = vmatprep.subr.mxu0 0.0
      %675 = vmatpush1.msra.mxu0 0.0
      %676 = vmatprep.subr.mxu0 0.0
      %677 = vmatpush1.msra.mxu0 0.0
      %678 = vmatprep.subr.mxu0 0.0
      %679 = vmatpush1.msra.mxu0 0.0
      %680 = vmatprep.mubr.f32.mxu0 0.0
      %681 = vmatmul.mubr.f32.gmra.mrb[0].mxu0 %v611
      %v682 = vpop.f32.mrb[0].mxu0
      %v683 = vadd.f32 0.0, %v682
      %v684 = vpop.f32.mrb[0].mxu0
      %685 = vmatprep.mubr.f32.mxu0 0.0
      %686 = vmatmul.mubr.f32.gmra.mrb[0].mxu0 %v614
      %v687 = vpop.f32.mrb[0].mxu0
      %v688 = vadd.f32 0.0, %v687
      %v689 = vpop.f32.mrb[0].mxu0
      %690 = vdwg.mxu0
      %691 = vmatprep.subr.mxu0 0.0
      %692 = vmatpush1.msra.mxu0 %v332
      %693 = vmatprep.subr.mxu0 0.0
      %694 = vmatpush1.msra.mxu0 %v333
      %695 = vmatprep.subr.mxu0 0.0
      %696 = vmatpush1.msra.mxu0 0.0
      %697 = vmatprep.subr.mxu0 0.0
      %698 = vmatpush1.msra.mxu0 0.0
      %699 = vmatprep.subr.mxu0 0.0
      %700 = vmatpush1.msra.mxu0 0.0
      %701 = vmatprep.subr.mxu0 0.0
      %702 = vmatpush1.msra.mxu0 0.0
      %703 = vmatprep.subr.mxu0 0.0
      %704 = vmatpush1.msra.mxu0 0.0
      %705 = vmatprep.subr.mxu0 0.0
      %706 = vmatpush1.msra.mxu0 0.0
      %707 = vmatprep.subr.mxu0 0.0
      %708 = vmatpush1.msra.mxu0 0.0
      %709 = vmatprep.subr.mxu0 0.0
      %710 = vmatpush1.msra.mxu0 0.0
      %711 = vmatprep.subr.mxu0 0.0
      %712 = vmatpush1.msra.mxu0 0.0
      %713 = vmatprep.subr.mxu0 0.0
      %714 = vmatpush1.msra.mxu0 0.0
      %715 = vmatprep.subr.mxu0 0.0
      %716 = vmatpush1.msra.mxu0 0.0
      %717 = vmatprep.subr.mxu0 0.0
      %718 = vmatpush1.msra.mxu0 0.0
      %719 = vmatprep.subr.mxu0 0.0
      %720 = vmatpush1.msra.mxu0 0.0
      %721 = vmatprep.subr.mxu0 0.0
      %722 = vmatpush1.msra.mxu0 0.0
      %723 = vmatprep.subr.mxu0 0.0
      %724 = vmatpush1.msra.mxu0 0.0
      %725 = vmatprep.subr.mxu0 0.0
      %726 = vmatpush1.msra.mxu0 0.0
      %727 = vmatprep.subr.mxu0 0.0
      %728 = vmatpush1.msra.mxu0 0.0
      %729 = vmatprep.subr.mxu0 0.0
      %730 = vmatpush1.msra.mxu0 0.0
      %731 = vmatprep.subr.mxu0 0.0
      %732 = vmatpush1.msra.mxu0 0.0
      %733 = vmatprep.subr.mxu0 0.0
      %734 = vmatpush1.msra.mxu0 0.0
      %735 = vmatprep.subr.mxu0 0.0
      %736 = vmatpush1.msra.mxu0 0.0
      %737 = vmatprep.subr.mxu0 0.0
      %738 = vmatpush1.msra.mxu0 0.0
      %739 = vmatprep.subr.mxu0 0.0
      %740 = vmatpush1.msra.mxu0 0.0
      %741 = vmatprep.subr.mxu0 0.0
      %742 = vmatpush1.msra.mxu0 0.0
      %743 = vmatprep.subr.mxu0 0.0
      %744 = vmatpush1.msra.mxu0 0.0
      %745 = vmatprep.subr.mxu0 0.0
      %746 = vmatpush1.msra.mxu0 0.0
      %747 = vmatprep.subr.mxu0 0.0
      %748 = vmatpush1.msra.mxu0 0.0
      %749 = vmatprep.subr.mxu0 0.0
      %750 = vmatpush1.msra.mxu0 0.0
      %751 = vmatprep.subr.mxu0 0.0
      %752 = vmatpush1.msra.mxu0 0.0
      %753 = vmatprep.subr.mxu0 0.0
      %754 = vmatpush1.msra.mxu0 0.0
      %755 = vmatprep.mubr.f32.mxu0 0.0
      %756 = vmatmul.mubr.f32.gmra.mrb[0].mxu0 %v611
      %v757 = vpop.f32.mrb[0].mxu0
      %v758 = vadd.f32 0.0, %v757
      %v759 = vpop.f32.mrb[0].mxu0
      %760 = vmatprep.mubr.f32.mxu0 0.0
      %761 = vmatmul.mubr.f32.gmra.mrb[0].mxu0 %v614
      %v762 = vpop.f32.mrb[0].mxu0
      %v763 = vadd.f32 0.0, %v762
      %v764 = vpop.f32.mrb[0].mxu0
      %765 = vdwg.mxu0
      %766 = vmatprep.subr.mxu0 0.0
      %767 = vmatpush1.msra.mxu0 %v683
      %768 = vmatprep.subr.mxu0 0.0
      %769 = vmatpush1.msra.mxu0 %v688
      %770 = vmatprep.subr.mxu0 0.0
      %771 = vmatpush1.msra.mxu0 0.0
      %772 = vmatprep.subr.mxu0 0.0
      %773 = vmatpush1.msra.mxu0 0.0
      %774 = vmatprep.subr.mxu0 0.0
      %775 = vmatpush1.msra.mxu0 0.0
      %776 = vmatprep.subr.mxu0 0.0
      %777 = vmatpush1.msra.mxu0 0.0
      %778 = vmatprep.subr.mxu0 0.0
      %779 = vmatpush1.msra.mxu0 0.0
      %780 = vmatprep.subr.mxu0 0.0
      %781 = vmatpush1.msra.mxu0 0.0
      %782 = vmatprep.subr.mxu0 0.0
      %783 = vmatpush1.msra.mxu0 0.0
      %784 = vmatprep.subr.mxu0 0.0
      %785 = vmatpush1.msra.mxu0 0.0
      %786 = vmatprep.subr.mxu0 0.0
      %787 = vmatpush1.msra.mxu0 0.0
      %788 = vmatprep.subr.mxu0 0.0
      %789 = vmatpush1.msra.mxu0 0.0
      %790 = vmatprep.subr.mxu0 0.0
      %791 = vmatpush1.msra.mxu0 0.0
      %792 = vmatprep.subr.mxu0 0.0
      %793 = vmatpush1.msra.mxu0 0.0
      %794 = vmatprep.subr.mxu0 0.0
      %795 = vmatpush1.msra.mxu0 0.0
      %796 = vmatprep.subr.mxu0 0.0
      %797 = vmatpush1.msra.mxu0 0.0
      %798 = vmatprep.subr.mxu0 0.0
      %799 = vmatpush1.msra.mxu0 0.0
      %800 = vmatprep.subr.mxu0 0.0
      %801 = vmatpush1.msra.mxu0 0.0
      %802 = vmatprep.subr.mxu0 0.0
      %803 = vmatpush1.msra.mxu0 0.0
      %804 = vmatprep.subr.mxu0 0.0
      %805 = vmatpush1.msra.mxu0 0.0
      %806 = vmatprep.subr.mxu0 0.0
      %807 = vmatpush1.msra.mxu0 0.0
      %808 = vmatprep.subr.mxu0 0.0
      %809 = vmatpush1.msra.mxu0 0.0
      %810 = vmatprep.subr.mxu0 0.0
      %811 = vmatpush1.msra.mxu0 0.0
      %812 = vmatprep.subr.mxu0 0.0
      %813 = vmatpush1.msra.mxu0 0.0
      %814 = vmatprep.subr.mxu0 0.0
      %815 = vmatpush1.msra.mxu0 0.0
      %816 = vmatprep.subr.mxu0 0.0
      %817 = vmatpush1.msra.mxu0 0.0
      %818 = vmatprep.subr.mxu0 0.0
      %819 = vmatpush1.msra.mxu0 0.0
      %820 = vmatprep.subr.mxu0 0.0
      %821 = vmatpush1.msra.mxu0 0.0
      %822 = vmatprep.subr.mxu0 0.0
      %823 = vmatpush1.msra.mxu0 0.0
      %824 = vmatprep.subr.mxu0 0.0
      %825 = vmatpush1.msra.mxu0 0.0
      %826 = vmatprep.subr.mxu0 0.0
      %827 = vmatpush1.msra.mxu0 0.0
      %828 = vmatprep.subr.mxu0 0.0
      %829 = vmatpush1.msra.mxu0 0.0
      %830 = vmatprep.mubr.f32.mxu0 0.0
      %831 = vmatmul.mubr.f32.gmra.mrb[0].mxu0 %v522
      %v832 = vpop.f32.mrb[0].mxu0
      %v833 = vadd.f32 %v758, %v832
      %v834 = vpop.f32.mrb[0].mxu0
      %835 = vmatprep.mubr.f32.mxu0 0.0
      %836 = vmatmul.mubr.f32.gmra.mrb[0].mxu0 %v525
      %v837 = vpop.f32.mrb[0].mxu0
      %v838 = vadd.f32 %v763, %v837
      %v839 = vpop.f32.mrb[0].mxu0
      %840 = vdwg.mxu0
      %v841 = vlaneseq
      %v842 = vshrl.u32 %v841, 7
      %v843 = vsub.s32 1, %v842
      %v844 = vrot.slane %v240, %v843
      %v845 = vadd.f32 %v833, %v844
      %v846 = vadd.f32 %v838, %v844
      %v847 = vmax.f32 %v845, 0.0
      %v848 = vmax.f32 %v846, 0.0
      %v849 = vadd.f32 %v847, %v320
      %v850 = vadd.f32 %v848, %v325
      %v851 = vmax.f32 %v849, 0.0
      %v852 = vmax.f32 %v850, 0.0
      %v853 = vld [vmem:[%s219 + $0x50] sm:$0xff]
      %v854 = vld [vmem:[%s219 + $0x58] sm:$0xff]
      %v855 = vld [vmem:[%s219 + $0x60] sm:$0xff]
      %v856 = vld [vmem:[%s219 + $0x68] sm:$0xff]
      %v857 = vld [vmem:[%s219 + $0x70] sm:$0xff]
      %v858 = vld [vmem:[%s219 + $0x78] sm:$0xff]
      %v859 = vld [vmem:[%s219 + $0x80] sm:$0xff]
      %v860 = vld [vmem:[%s219 + $0x88] sm:$0xff]
      %vm861 = vcmp.eq.s32.totalorder %v334, 2
      %vm862 = vcmp.eq.s32.totalorder %v335, 2
      %vm863 = vcmp.ge.s32.totalorder %v360, 2
      %vm864 = vcmp.ge.s32.totalorder %v361, 2
      %vm865 = vmand %vm861, %vm863
      %vm866 = vmand %vm862, %vm864
      %v867 = vsel %vm865, 1, 0
      %v868 = vsel %vm866, 1, 0
      %v869 = vcvt.s32.f32 %v867
      %v870 = vcvt.s32.f32 %v868
      %v872 = vsel %vm520, %v851, 0
      %v875 = vsel %vm520, %v852, 0
      %877 = vmatprep.subr.mxu0 0.0
      %878 = vmatpush1.msra.mxu0 %v853
      %879 = vmatprep.subr.mxu0 0.0
      %880 = vmatpush1.msra.mxu0 %v854
      %881 = vmatprep.subr.mxu0 0.0
      %882 = vmatpush1.msra.mxu0 0.0
      %883 = vmatprep.subr.mxu0 0.0
      %884 = vmatpush1.msra.mxu0 0.0
      %885 = vmatprep.subr.mxu0 0.0
      %886 = vmatpush1.msra.mxu0 0.0
      %887 = vmatprep.subr.mxu0 0.0
      %888 = vmatpush1.msra.mxu0 0.0
      %889 = vmatprep.subr.mxu0 0.0
      %890 = vmatpush1.msra.mxu0 0.0
      %891 = vmatprep.subr.mxu0 0.0
      %892 = vmatpush1.msra.mxu0 0.0
      %893 = vmatprep.subr.mxu0 0.0
      %894 = vmatpush1.msra.mxu0 0.0
      %895 = vmatprep.subr.mxu0 0.0
      %896 = vmatpush1.msra.mxu0 0.0
      %897 = vmatprep.subr.mxu0 0.0
      %898 = vmatpush1.msra.mxu0 0.0
      %899 = vmatprep.subr.mxu0 0.0
      %900 = vmatpush1.msra.mxu0 0.0
      %901 = vmatprep.subr.mxu0 0.0
      %902 = vmatpush1.msra.mxu0 0.0
      %903 = vmatprep.subr.mxu0 0.0
      %904 = vmatpush1.msra.mxu0 0.0
      %905 = vmatprep.subr.mxu0 0.0
      %906 = vmatpush1.msra.mxu0 0.0
      %907 = vmatprep.subr.mxu0 0.0
      %908 = vmatpush1.msra.mxu0 0.0
      %909 = vmatprep.subr.mxu0 0.0
      %910 = vmatpush1.msra.mxu0 0.0
      %911 = vmatprep.subr.mxu0 0.0
      %912 = vmatpush1.msra.mxu0 0.0
      %913 = vmatprep.subr.mxu0 0.0
      %914 = vmatpush1.msra.mxu0 0.0
      %915 = vmatprep.subr.mxu0 0.0
      %916 = vmatpush1.msra.mxu0 0.0
      %917 = vmatprep.subr.mxu0 0.0
      %918 = vmatpush1.msra.mxu0 0.0
      %919 = vmatprep.subr.mxu0 0.0
      %920 = vmatpush1.msra.mxu0 0.0
      %921 = vmatprep.subr.mxu0 0.0
      %922 = vmatpush1.msra.mxu0 0.0
      %923 = vmatprep.subr.mxu0 0.0
      %924 = vmatpush1.msra.mxu0 0.0
      %925 = vmatprep.subr.mxu0 0.0
      %926 = vmatpush1.msra.mxu0 0.0
      %927 = vmatprep.subr.mxu0 0.0
      %928 = vmatpush1.msra.mxu0 0.0
      %929 = vmatprep.subr.mxu0 0.0
      %930 = vmatpush1.msra.mxu0 0.0
      %931 = vmatprep.subr.mxu0 0.0
      %932 = vmatpush1.msra.mxu0 0.0
      %933 = vmatprep.subr.mxu0 0.0
      %934 = vmatpush1.msra.mxu0 0.0
      %935 = vmatprep.subr.mxu0 0.0
      %936 = vmatpush1.msra.mxu0 0.0
      %937 = vmatprep.subr.mxu0 0.0
      %938 = vmatpush1.msra.mxu0 0.0
      %939 = vmatprep.subr.mxu0 0.0
      %940 = vmatpush1.msra.mxu0 0.0
      %941 = vmatprep.mubr.f32.mxu0 0.0
      %942 = vmatmul.mubr.f32.gmra.mrb[0].mxu0 %v872
      %v943 = vpop.f32.mrb[0].mxu0
      %v944 = vadd.f32 0.0, %v943
      %v945 = vpop.f32.mrb[0].mxu0
      %946 = vmatprep.mubr.f32.mxu0 0.0
      %947 = vmatmul.mubr.f32.gmra.mrb[0].mxu0 %v875
      %v948 = vpop.f32.mrb[0].mxu0
      %v949 = vadd.f32 0.0, %v948
      %v950 = vpop.f32.mrb[0].mxu0
      %951 = vdwg.mxu0
      %952 = vmatprep.subr.mxu0 0.0
      %953 = vmatpush1.msra.mxu0 %v855
      %954 = vmatprep.subr.mxu0 0.0
      %955 = vmatpush1.msra.mxu0 %v856
      %956 = vmatprep.subr.mxu0 0.0
      %957 = vmatpush1.msra.mxu0 0.0
      %958 = vmatprep.subr.mxu0 0.0
      %959 = vmatpush1.msra.mxu0 0.0
      %960 = vmatprep.subr.mxu0 0.0
      %961 = vmatpush1.msra.mxu0 0.0
      %962 = vmatprep.subr.mxu0 0.0
      %963 = vmatpush1.msra.mxu0 0.0
      %964 = vmatprep.subr.mxu0 0.0
      %965 = vmatpush1.msra.mxu0 0.0
      %966 = vmatprep.subr.mxu0 0.0
      %967 = vmatpush1.msra.mxu0 0.0
      %968 = vmatprep.subr.mxu0 0.0
      %969 = vmatpush1.msra.mxu0 0.0
      %970 = vmatprep.subr.mxu0 0.0
      %971 = vmatpush1.msra.mxu0 0.0
      %972 = vmatprep.subr.mxu0 0.0
      %973 = vmatpush1.msra.mxu0 0.0
      %974 = vmatprep.subr.mxu0 0.0
      %975 = vmatpush1.msra.mxu0 0.0
      %976 = vmatprep.subr.mxu0 0.0
      %977 = vmatpush1.msra.mxu0 0.0
      %978 = vmatprep.subr.mxu0 0.0
      %979 = vmatpush1.msra.mxu0 0.0
      %980 = vmatprep.subr.mxu0 0.0
      %981 = vmatpush1.msra.mxu0 0.0
      %982 = vmatprep.subr.mxu0 0.0
      %983 = vmatpush1.msra.mxu0 0.0
      %984 = vmatprep.subr.mxu0 0.0
      %985 = vmatpush1.msra.mxu0 0.0
      %986 = vmatprep.subr.mxu0 0.0
      %987 = vmatpush1.msra.mxu0 0.0
      %988 = vmatprep.subr.mxu0 0.0
      %989 = vmatpush1.msra.mxu0 0.0
      %990 = vmatprep.subr.mxu0 0.0
      %991 = vmatpush1.msra.mxu0 0.0
      %992 = vmatprep.subr.mxu0 0.0
      %993 = vmatpush1.msra.mxu0 0.0
      %994 = vmatprep.subr.mxu0 0.0
      %995 = vmatpush1.msra.mxu0 0.0
      %996 = vmatprep.subr.mxu0 0.0
      %997 = vmatpush1.msra.mxu0 0.0
      %998 = vmatprep.subr.mxu0 0.0
      %999 = vmatpush1.msra.mxu0 0.0
      %1000 = vmatprep.subr.mxu0 0.0
      %1001 = vmatpush1.msra.mxu0 0.0
      %1002 = vmatprep.subr.mxu0 0.0
      %1003 = vmatpush1.msra.mxu0 0.0
      %1004 = vmatprep.subr.mxu0 0.0
      %1005 = vmatpush1.msra.mxu0 0.0
      %1006 = vmatprep.subr.mxu0 0.0
      %1007 = vmatpush1.msra.mxu0 0.0
      %1008 = vmatprep.subr.mxu0 0.0
      %1009 = vmatpush1.msra.mxu0 0.0
      %1010 = vmatprep.subr.mxu0 0.0
      %1011 = vmatpush1.msra.mxu0 0.0
      %1012 = vmatprep.subr.mxu0 0.0
      %1013 = vmatpush1.msra.mxu0 0.0
      %1014 = vmatprep.subr.mxu0 0.0
      %1015 = vmatpush1.msra.mxu0 0.0
      %1016 = vmatprep.mubr.f32.mxu0 0.0
      %1017 = vmatmul.mubr.f32.gmra.mrb[0].mxu0 %v872
      %v1018 = vpop.f32.mrb[0].mxu0
      %v1019 = vadd.f32 0.0, %v1018
      %v1020 = vpop.f32.mrb[0].mxu0
      %1021 = vmatprep.mubr.f32.mxu0 0.0
      %1022 = vmatmul.mubr.f32.gmra.mrb[0].mxu0 %v875
      %v1023 = vpop.f32.mrb[0].mxu0
      %v1024 = vadd.f32 0.0, %v1023
      %v1025 = vpop.f32.mrb[0].mxu0
      %1026 = vdwg.mxu0
      %v1028 = vsel %vm520, %v869, 0
      %v1031 = vsel %vm520, %v870, 0
      %1033 = vmatprep.subr.mxu0 0.0
      %1034 = vmatpush1.msra.mxu0 %v944
      %1035 = vmatprep.subr.mxu0 0.0
      %1036 = vmatpush1.msra.mxu0 %v949
      %1037 = vmatprep.subr.mxu0 0.0
      %1038 = vmatpush1.msra.mxu0 0.0
      %1039 = vmatprep.subr.mxu0 0.0
      %1040 = vmatpush1.msra.mxu0 0.0
      %1041 = vmatprep.subr.mxu0 0.0
      %1042 = vmatpush1.msra.mxu0 0.0
      %1043 = vmatprep.subr.mxu0 0.0
      %1044 = vmatpush1.msra.mxu0 0.0
      %1045 = vmatprep.subr.mxu0 0.0
      %1046 = vmatpush1.msra.mxu0 0.0
      %1047 = vmatprep.subr.mxu0 0.0
      %1048 = vmatpush1.msra.mxu0 0.0
      %1049 = vmatprep.subr.mxu0 0.0
      %1050 = vmatpush1.msra.mxu0 0.0
      %1051 = vmatprep.subr.mxu0 0.0
      %1052 = vmatpush1.msra.mxu0 0.0
      %1053 = vmatprep.subr.mxu0 0.0
      %1054 = vmatpush1.msra.mxu0 0.0
      %1055 = vmatprep.subr.mxu0 0.0
      %1056 = vmatpush1.msra.mxu0 0.0
      %1057 = vmatprep.subr.mxu0 0.0
      %1058 = vmatpush1.msra.mxu0 0.0
      %1059 = vmatprep.subr.mxu0 0.0
      %1060 = vmatpush1.msra.mxu0 0.0
      %1061 = vmatprep.subr.mxu0 0.0
      %1062 = vmatpush1.msra.mxu0 0.0
      %1063 = vmatprep.subr.mxu0 0.0
      %1064 = vmatpush1.msra.mxu0 0.0
      %1065 = vmatprep.subr.mxu0 0.0
      %1066 = vmatpush1.msra.mxu0 0.0
      %1067 = vmatprep.subr.mxu0 0.0
      %1068 = vmatpush1.msra.mxu0 0.0
      %1069 = vmatprep.subr.mxu0 0.0
      %1070 = vmatpush1.msra.mxu0 0.0
      %1071 = vmatprep.subr.mxu0 0.0
      %1072 = vmatpush1.msra.mxu0 0.0
      %1073 = vmatprep.subr.mxu0 0.0
      %1074 = vmatpush1.msra.mxu0 0.0
      %1075 = vmatprep.subr.mxu0 0.0
      %1076 = vmatpush1.msra.mxu0 0.0
      %1077 = vmatprep.subr.mxu0 0.0
      %1078 = vmatpush1.msra.mxu0 0.0
      %1079 = vmatprep.subr.mxu0 0.0
      %1080 = vmatpush1.msra.mxu0 0.0
      %1081 = vmatprep.subr.mxu0 0.0
      %1082 = vmatpush1.msra.mxu0 0.0
      %1083 = vmatprep.subr.mxu0 0.0
      %1084 = vmatpush1.msra.mxu0 0.0
      %1085 = vmatprep.subr.mxu0 0.0
      %1086 = vmatpush1.msra.mxu0 0.0
      %1087 = vmatprep.subr.mxu0 0.0
      %1088 = vmatpush1.msra.mxu0 0.0
      %1089 = vmatprep.subr.mxu0 0.0
      %1090 = vmatpush1.msra.mxu0 0.0
      %1091 = vmatprep.subr.mxu0 0.0
      %1092 = vmatpush1.msra.mxu0 0.0
      %1093 = vmatprep.subr.mxu0 0.0
      %1094 = vmatpush1.msra.mxu0 0.0
      %1095 = vmatprep.subr.mxu0 0.0
      %1096 = vmatpush1.msra.mxu0 0.0
      %1097 = vmatprep.mubr.f32.mxu0 0.0
      %1098 = vmatmul.mubr.f32.gmra.mrb[0].mxu0 %v1028
      %v1099 = vpop.f32.mrb[0].mxu0
      %v1100 = vadd.f32 %v1019, %v1099
      %v1101 = vpop.f32.mrb[0].mxu0
      %1102 = vmatprep.mubr.f32.mxu0 0.0
      %1103 = vmatmul.mubr.f32.gmra.mrb[0].mxu0 %v1031
      %v1104 = vpop.f32.mrb[0].mxu0
      %v1105 = vadd.f32 %v1024, %v1104
      %v1106 = vpop.f32.mrb[0].mxu0
      %1107 = vdwg.mxu0
      %v1108 = vlaneseq
      %v1109 = vshrl.u32 %v1108, 7
      %v1110 = vsub.s32 3, %v1109
      %v1111 = vrot.slane %v240, %v1110
      %v1112 = vadd.f32 %v1100, %v1111
      %v1113 = vadd.f32 %v1105, %v1111
      %v1114 = vmax.f32 %v1112, 0.0
      %v1115 = vmax.f32 %v1113, 0.0
      %v1117 = vsel %vm520, %v1114, 0
      %v1120 = vsel %vm520, %v1115, 0
      %1122 = vmatprep.subr.mxu0 0.0
      %1123 = vmatpush1.msra.mxu0 %v857
      %1124 = vmatprep.subr.mxu0 0.0
      %1125 = vmatpush1.msra.mxu0 %v858
      %1126 = vmatprep.subr.mxu0 0.0
      %1127 = vmatpush1.msra.mxu0 0.0
      %1128 = vmatprep.subr.mxu0 0.0
      %1129 = vmatpush1.msra.mxu0 0.0
      %1130 = vmatprep.subr.mxu0 0.0
      %1131 = vmatpush1.msra.mxu0 0.0
      %1132 = vmatprep.subr.mxu0 0.0
      %1133 = vmatpush1.msra.mxu0 0.0
      %1134 = vmatprep.subr.mxu0 0.0
      %1135 = vmatpush1.msra.mxu0 0.0
      %1136 = vmatprep.subr.mxu0 0.0
      %1137 = vmatpush1.msra.mxu0 0.0
      %1138 = vmatprep.subr.mxu0 0.0
      %1139 = vmatpush1.msra.mxu0 0.0
      %1140 = vmatprep.subr.mxu0 0.0
      %1141 = vmatpush1.msra.mxu0 0.0
      %1142 = vmatprep.subr.mxu0 0.0
      %1143 = vmatpush1.msra.mxu0 0.0
      %1144 = vmatprep.subr.mxu0 0.0
      %1145 = vmatpush1.msra.mxu0 0.0
      %1146 = vmatprep.subr.mxu0 0.0
      %1147 = vmatpush1.msra.mxu0 0.0
      %1148 = vmatprep.subr.mxu0 0.0
      %1149 = vmatpush1.msra.mxu0 0.0
      %1150 = vmatprep.subr.mxu0 0.0
      %1151 = vmatpush1.msra.mxu0 0.0
      %1152 = vmatprep.subr.mxu0 0.0
      %1153 = vmatpush1.msra.mxu0 0.0
      %1154 = vmatprep.subr.mxu0 0.0
      %1155 = vmatpush1.msra.mxu0 0.0
      %1156 = vmatprep.subr.mxu0 0.0
      %1157 = vmatpush1.msra.mxu0 0.0
      %1158 = vmatprep.subr.mxu0 0.0
      %1159 = vmatpush1.msra.mxu0 0.0
      %1160 = vmatprep.subr.mxu0 0.0
      %1161 = vmatpush1.msra.mxu0 0.0
      %1162 = vmatprep.subr.mxu0 0.0
      %1163 = vmatpush1.msra.mxu0 0.0
      %1164 = vmatprep.subr.mxu0 0.0
      %1165 = vmatpush1.msra.mxu0 0.0
      %1166 = vmatprep.subr.mxu0 0.0
      %1167 = vmatpush1.msra.mxu0 0.0
      %1168 = vmatprep.subr.mxu0 0.0
      %1169 = vmatpush1.msra.mxu0 0.0
      %1170 = vmatprep.subr.mxu0 0.0
      %1171 = vmatpush1.msra.mxu0 0.0
      %1172 = vmatprep.subr.mxu0 0.0
      %1173 = vmatpush1.msra.mxu0 0.0
      %1174 = vmatprep.subr.mxu0 0.0
      %1175 = vmatpush1.msra.mxu0 0.0
      %1176 = vmatprep.subr.mxu0 0.0
      %1177 = vmatpush1.msra.mxu0 0.0
      %1178 = vmatprep.subr.mxu0 0.0
      %1179 = vmatpush1.msra.mxu0 0.0
      %1180 = vmatprep.subr.mxu0 0.0
      %1181 = vmatpush1.msra.mxu0 0.0
      %1182 = vmatprep.subr.mxu0 0.0
      %1183 = vmatpush1.msra.mxu0 0.0
      %1184 = vmatprep.subr.mxu0 0.0
      %1185 = vmatpush1.msra.mxu0 0.0
      %1186 = vmatprep.mubr.f32.mxu0 0.0
      %1187 = vmatmul.mubr.f32.gmra.mrb[0].mxu0 %v1117
      %v1188 = vpop.f32.mrb[0].mxu0
      %v1189 = vadd.f32 0.0, %v1188
      %v1190 = vpop.f32.mrb[0].mxu0
      %1191 = vmatprep.mubr.f32.mxu0 0.0
      %1192 = vmatmul.mubr.f32.gmra.mrb[0].mxu0 %v1120
      %v1193 = vpop.f32.mrb[0].mxu0
      %v1194 = vadd.f32 0.0, %v1193
      %v1195 = vpop.f32.mrb[0].mxu0
      %1196 = vdwg.mxu0
      %1197 = vmatprep.subr.mxu0 0.0
      %1198 = vmatpush1.msra.mxu0 %v859
      %1199 = vmatprep.subr.mxu0 0.0
      %1200 = vmatpush1.msra.mxu0 %v860
      %1201 = vmatprep.subr.mxu0 0.0
      %1202 = vmatpush1.msra.mxu0 0.0
      %1203 = vmatprep.subr.mxu0 0.0
      %1204 = vmatpush1.msra.mxu0 0.0
      %1205 = vmatprep.subr.mxu0 0.0
      %1206 = vmatpush1.msra.mxu0 0.0
      %1207 = vmatprep.subr.mxu0 0.0
      %1208 = vmatpush1.msra.mxu0 0.0
      %1209 = vmatprep.subr.mxu0 0.0
      %1210 = vmatpush1.msra.mxu0 0.0
      %1211 = vmatprep.subr.mxu0 0.0
      %1212 = vmatpush1.msra.mxu0 0.0
      %1213 = vmatprep.subr.mxu0 0.0
      %1214 = vmatpush1.msra.mxu0 0.0
      %1215 = vmatprep.subr.mxu0 0.0
      %1216 = vmatpush1.msra.mxu0 0.0
      %1217 = vmatprep.subr.mxu0 0.0
      %1218 = vmatpush1.msra.mxu0 0.0
      %1219 = vmatprep.subr.mxu0 0.0
      %1220 = vmatpush1.msra.mxu0 0.0
      %1221 = vmatprep.subr.mxu0 0.0
      %1222 = vmatpush1.msra.mxu0 0.0
      %1223 = vmatprep.subr.mxu0 0.0
      %1224 = vmatpush1.msra.mxu0 0.0
      %1225 = vmatprep.subr.mxu0 0.0
      %1226 = vmatpush1.msra.mxu0 0.0
      %1227 = vmatprep.subr.mxu0 0.0
      %1228 = vmatpush1.msra.mxu0 0.0
      %1229 = vmatprep.subr.mxu0 0.0
      %1230 = vmatpush1.msra.mxu0 0.0
      %1231 = vmatprep.subr.mxu0 0.0
      %1232 = vmatpush1.msra.mxu0 0.0
      %1233 = vmatprep.subr.mxu0 0.0
      %1234 = vmatpush1.msra.mxu0 0.0
      %1235 = vmatprep.subr.mxu0 0.0
      %1236 = vmatpush1.msra.mxu0 0.0
      %1237 = vmatprep.subr.mxu0 0.0
      %1238 = vmatpush1.msra.mxu0 0.0
      %1239 = vmatprep.subr.mxu0 0.0
      %1240 = vmatpush1.msra.mxu0 0.0
      %1241 = vmatprep.subr.mxu0 0.0
      %1242 = vmatpush1.msra.mxu0 0.0
      %1243 = vmatprep.subr.mxu0 0.0
      %1244 = vmatpush1.msra.mxu0 0.0
      %1245 = vmatprep.subr.mxu0 0.0
      %1246 = vmatpush1.msra.mxu0 0.0
      %1247 = vmatprep.subr.mxu0 0.0
      %1248 = vmatpush1.msra.mxu0 0.0
      %1249 = vmatprep.subr.mxu0 0.0
      %1250 = vmatpush1.msra.mxu0 0.0
      %1251 = vmatprep.subr.mxu0 0.0
      %1252 = vmatpush1.msra.mxu0 0.0
      %1253 = vmatprep.subr.mxu0 0.0
      %1254 = vmatpush1.msra.mxu0 0.0
      %1255 = vmatprep.subr.mxu0 0.0
      %1256 = vmatpush1.msra.mxu0 0.0
      %1257 = vmatprep.subr.mxu0 0.0
      %1258 = vmatpush1.msra.mxu0 0.0
      %1259 = vmatprep.subr.mxu0 0.0
      %1260 = vmatpush1.msra.mxu0 0.0
      %1261 = vmatprep.mubr.f32.mxu0 0.0
      %1262 = vmatmul.mubr.f32.gmra.mrb[0].mxu0 %v1117
      %v1263 = vpop.f32.mrb[0].mxu0
      %v1264 = vadd.f32 0.0, %v1263
      %v1265 = vpop.f32.mrb[0].mxu0
      %1266 = vmatprep.mubr.f32.mxu0 0.0
      %1267 = vmatmul.mubr.f32.gmra.mrb[0].mxu0 %v1120
      %v1268 = vpop.f32.mrb[0].mxu0
      %v1269 = vadd.f32 0.0, %v1268
      %v1270 = vpop.f32.mrb[0].mxu0
      %1271 = vdwg.mxu0
      %1272 = vmatprep.subr.mxu0 0.0
      %1273 = vmatpush1.msra.mxu0 %v1189
      %1274 = vmatprep.subr.mxu0 0.0
      %1275 = vmatpush1.msra.mxu0 %v1194
      %1276 = vmatprep.subr.mxu0 0.0
      %1277 = vmatpush1.msra.mxu0 0.0
      %1278 = vmatprep.subr.mxu0 0.0
      %1279 = vmatpush1.msra.mxu0 0.0
      %1280 = vmatprep.subr.mxu0 0.0
      %1281 = vmatpush1.msra.mxu0 0.0
      %1282 = vmatprep.subr.mxu0 0.0
      %1283 = vmatpush1.msra.mxu0 0.0
      %1284 = vmatprep.subr.mxu0 0.0
      %1285 = vmatpush1.msra.mxu0 0.0
      %1286 = vmatprep.subr.mxu0 0.0
      %1287 = vmatpush1.msra.mxu0 0.0
      %1288 = vmatprep.subr.mxu0 0.0
      %1289 = vmatpush1.msra.mxu0 0.0
      %1290 = vmatprep.subr.mxu0 0.0
      %1291 = vmatpush1.msra.mxu0 0.0
      %1292 = vmatprep.subr.mxu0 0.0
      %1293 = vmatpush1.msra.mxu0 0.0
      %1294 = vmatprep.subr.mxu0 0.0
      %1295 = vmatpush1.msra.mxu0 0.0
      %1296 = vmatprep.subr.mxu0 0.0
      %1297 = vmatpush1.msra.mxu0 0.0
      %1298 = vmatprep.subr.mxu0 0.0
      %1299 = vmatpush1.msra.mxu0 0.0
      %1300 = vmatprep.subr.mxu0 0.0
      %1301 = vmatpush1.msra.mxu0 0.0
      %1302 = vmatprep.subr.mxu0 0.0
      %1303 = vmatpush1.msra.mxu0 0.0
      %1304 = vmatprep.subr.mxu0 0.0
      %1305 = vmatpush1.msra.mxu0 0.0
      %1306 = vmatprep.subr.mxu0 0.0
      %1307 = vmatpush1.msra.mxu0 0.0
      %1308 = vmatprep.subr.mxu0 0.0
      %1309 = vmatpush1.msra.mxu0 0.0
      %1310 = vmatprep.subr.mxu0 0.0
      %1311 = vmatpush1.msra.mxu0 0.0
      %1312 = vmatprep.subr.mxu0 0.0
      %1313 = vmatpush1.msra.mxu0 0.0
      %1314 = vmatprep.subr.mxu0 0.0
      %1315 = vmatpush1.msra.mxu0 0.0
      %1316 = vmatprep.subr.mxu0 0.0
      %1317 = vmatpush1.msra.mxu0 0.0
      %1318 = vmatprep.subr.mxu0 0.0
      %1319 = vmatpush1.msra.mxu0 0.0
      %1320 = vmatprep.subr.mxu0 0.0
      %1321 = vmatpush1.msra.mxu0 0.0
      %1322 = vmatprep.subr.mxu0 0.0
      %1323 = vmatpush1.msra.mxu0 0.0
      %1324 = vmatprep.subr.mxu0 0.0
      %1325 = vmatpush1.msra.mxu0 0.0
      %1326 = vmatprep.subr.mxu0 0.0
      %1327 = vmatpush1.msra.mxu0 0.0
      %1328 = vmatprep.subr.mxu0 0.0
      %1329 = vmatpush1.msra.mxu0 0.0
      %1330 = vmatprep.subr.mxu0 0.0
      %1331 = vmatpush1.msra.mxu0 0.0
      %1332 = vmatprep.subr.mxu0 0.0
      %1333 = vmatpush1.msra.mxu0 0.0
      %1334 = vmatprep.subr.mxu0 0.0
      %1335 = vmatpush1.msra.mxu0 0.0
      %1336 = vmatprep.mubr.f32.mxu0 0.0
      %1337 = vmatmul.mubr.f32.gmra.mrb[0].mxu0 %v1028
      %v1338 = vpop.f32.mrb[0].mxu0
      %v1339 = vadd.f32 %v1264, %v1338
      %v1340 = vpop.f32.mrb[0].mxu0
      %1341 = vmatprep.mubr.f32.mxu0 0.0
      %1342 = vmatmul.mubr.f32.gmra.mrb[0].mxu0 %v1031
      %v1343 = vpop.f32.mrb[0].mxu0
      %v1344 = vadd.f32 %v1269, %v1343
      %v1345 = vpop.f32.mrb[0].mxu0
      %1346 = vdwg.mxu0
      %v1347 = vlaneseq
      %v1348 = vshrl.u32 %v1347, 7
      %v1349 = vsub.s32 4, %v1348
      %v1350 = vrot.slane %v240, %v1349
      %v1351 = vadd.f32 %v1339, %v1350
      %v1352 = vadd.f32 %v1344, %v1350
      %v1353 = vmax.f32 %v1351, 0.0
      %v1354 = vmax.f32 %v1352, 0.0
      %v1355 = vadd.f32 %v1353, %v851
      %v1356 = vadd.f32 %v1354, %v852
      %v1357 = vmax.f32 %v1355, 0.0
      %v1358 = vmax.f32 %v1356, 0.0
      %v1359 = vld [vmem:[%s219 + $0x90] sm:$0xff]
      %v1360 = vld [vmem:[%s219 + $0x98] sm:$0xff]
      %v1361 = vld [vmem:[%s219 + $0xa0] sm:$0xff]
      %v1362 = vld [vmem:[%s219 + $0xa8] sm:$0xff]
      %v1363 = vld [vmem:[%s219 + $0xb0] sm:$0xff]
      %v1364 = vld [vmem:[%s219 + $0xb8] sm:$0xff]
      %v1365 = vld [vmem:[%s219 + $0xc0] sm:$0xff]
      %v1366 = vld [vmem:[%s219 + $0xc8] sm:$0xff]
      %vm1367 = vcmp.eq.s32.totalorder %v334, 4
      %vm1368 = vcmp.eq.s32.totalorder %v335, 4
      %vm1369 = vcmp.ge.s32.totalorder %v360, 4
      %vm1370 = vcmp.ge.s32.totalorder %v361, 4
      %vm1371 = vmand %vm1367, %vm1369
      %vm1372 = vmand %vm1368, %vm1370
      %v1373 = vsel %vm1371, 1, 0
      %v1374 = vsel %vm1372, 1, 0
      %v1375 = vcvt.s32.f32 %v1373
      %v1376 = vcvt.s32.f32 %v1374
      %v1378 = vsel %vm520, %v1357, 0
      %v1381 = vsel %vm520, %v1358, 0
      %1383 = vmatprep.subr.mxu0 0.0
      %1384 = vmatpush1.msra.mxu0 %v1359
      %1385 = vmatprep.subr.mxu0 0.0
      %1386 = vmatpush1.msra.mxu0 %v1360
      %1387 = vmatprep.subr.mxu0 0.0
      %1388 = vmatpush1.msra.mxu0 0.0
      %1389 = vmatprep.subr.mxu0 0.0
      %1390 = vmatpush1.msra.mxu0 0.0
      %1391 = vmatprep.subr.mxu0 0.0
      %1392 = vmatpush1.msra.mxu0 0.0
      %1393 = vmatprep.subr.mxu0 0.0
      %1394 = vmatpush1.msra.mxu0 0.0
      %1395 = vmatprep.subr.mxu0 0.0
      %1396 = vmatpush1.msra.mxu0 0.0
      %1397 = vmatprep.subr.mxu0 0.0
      %1398 = vmatpush1.msra.mxu0 0.0
      %1399 = vmatprep.subr.mxu0 0.0
      %1400 = vmatpush1.msra.mxu0 0.0
      %1401 = vmatprep.subr.mxu0 0.0
      %1402 = vmatpush1.msra.mxu0 0.0
      %1403 = vmatprep.subr.mxu0 0.0
      %1404 = vmatpush1.msra.mxu0 0.0
      %1405 = vmatprep.subr.mxu0 0.0
      %1406 = vmatpush1.msra.mxu0 0.0
      %1407 = vmatprep.subr.mxu0 0.0
      %1408 = vmatpush1.msra.mxu0 0.0
      %1409 = vmatprep.subr.mxu0 0.0
      %1410 = vmatpush1.msra.mxu0 0.0
      %1411 = vmatprep.subr.mxu0 0.0
      %1412 = vmatpush1.msra.mxu0 0.0
      %1413 = vmatprep.subr.mxu0 0.0
      %1414 = vmatpush1.msra.mxu0 0.0
      %1415 = vmatprep.subr.mxu0 0.0
      %1416 = vmatpush1.msra.mxu0 0.0
      %1417 = vmatprep.subr.mxu0 0.0
      %1418 = vmatpush1.msra.mxu0 0.0
      %1419 = vmatprep.subr.mxu0 0.0
      %1420 = vmatpush1.msra.mxu0 0.0
      %1421 = vmatprep.subr.mxu0 0.0
      %1422 = vmatpush1.msra.mxu0 0.0
      %1423 = vmatprep.subr.mxu0 0.0
      %1424 = vmatpush1.msra.mxu0 0.0
      %1425 = vmatprep.subr.mxu0 0.0
      %1426 = vmatpush1.msra.mxu0 0.0
      %1427 = vmatprep.subr.mxu0 0.0
      %1428 = vmatpush1.msra.mxu0 0.0
      %1429 = vmatprep.subr.mxu0 0.0
      %1430 = vmatpush1.msra.mxu0 0.0
      %1431 = vmatprep.subr.mxu0 0.0
      %1432 = vmatpush1.msra.mxu0 0.0
      %1433 = vmatprep.subr.mxu0 0.0
      %1434 = vmatpush1.msra.mxu0 0.0
      %1435 = vmatprep.subr.mxu0 0.0
      %1436 = vmatpush1.msra.mxu0 0.0
      %1437 = vmatprep.subr.mxu0 0.0
      %1438 = vmatpush1.msra.mxu0 0.0
      %1439 = vmatprep.subr.mxu0 0.0
      %1440 = vmatpush1.msra.mxu0 0.0
      %1441 = vmatprep.subr.mxu0 0.0
      %1442 = vmatpush1.msra.mxu0 0.0
      %1443 = vmatprep.subr.mxu0 0.0
      %1444 = vmatpush1.msra.mxu0 0.0
      %1445 = vmatprep.subr.mxu0 0.0
      %1446 = vmatpush1.msra.mxu0 0.0
      %1447 = vmatprep.mubr.f32.mxu0 0.0
      %1448 = vmatmul.mubr.f32.gmra.mrb[0].mxu0 %v1378
      %v1449 = vpop.f32.mrb[0].mxu0
      %v1450 = vadd.f32 0.0, %v1449
      %v1451 = vpop.f32.mrb[0].mxu0
      %1452 = vmatprep.mubr.f32.mxu0 0.0
      %1453 = vmatmul.mubr.f32.gmra.mrb[0].mxu0 %v1381
      %v1454 = vpop.f32.mrb[0].mxu0
      %v1455 = vadd.f32 0.0, %v1454
      %v1456 = vpop.f32.mrb[0].mxu0
      %1457 = vdwg.mxu0
      %1458 = vmatprep.subr.mxu0 0.0
      %1459 = vmatpush1.msra.mxu0 %v1361
      %1460 = vmatprep.subr.mxu0 0.0
      %1461 = vmatpush1.msra.mxu0 %v1362
      %1462 = vmatprep.subr.mxu0 0.0
      %1463 = vmatpush1.msra.mxu0 0.0
      %1464 = vmatprep.subr.mxu0 0.0
      %1465 = vmatpush1.msra.mxu0 0.0
      %1466 = vmatprep.subr.mxu0 0.0
      %1467 = vmatpush1.msra.mxu0 0.0
      %1468 = vmatprep.subr.mxu0 0.0
      %1469 = vmatpush1.msra.mxu0 0.0
      %1470 = vmatprep.subr.mxu0 0.0
      %1471 = vmatpush1.msra.mxu0 0.0
      %1472 = vmatprep.subr.mxu0 0.0
      %1473 = vmatpush1.msra.mxu0 0.0
      %1474 = vmatprep.subr.mxu0 0.0
      %1475 = vmatpush1.msra.mxu0 0.0
      %1476 = vmatprep.subr.mxu0 0.0
      %1477 = vmatpush1.msra.mxu0 0.0
      %1478 = vmatprep.subr.mxu0 0.0
      %1479 = vmatpush1.msra.mxu0 0.0
      %1480 = vmatprep.subr.mxu0 0.0
      %1481 = vmatpush1.msra.mxu0 0.0
      %1482 = vmatprep.subr.mxu0 0.0
      %1483 = vmatpush1.msra.mxu0 0.0
      %1484 = vmatprep.subr.mxu0 0.0
      %1485 = vmatpush1.msra.mxu0 0.0
      %1486 = vmatprep.subr.mxu0 0.0
      %1487 = vmatpush1.msra.mxu0 0.0
      %1488 = vmatprep.subr.mxu0 0.0
      %1489 = vmatpush1.msra.mxu0 0.0
      %1490 = vmatprep.subr.mxu0 0.0
      %1491 = vmatpush1.msra.mxu0 0.0
      %1492 = vmatprep.subr.mxu0 0.0
      %1493 = vmatpush1.msra.mxu0 0.0
      %1494 = vmatprep.subr.mxu0 0.0
      %1495 = vmatpush1.msra.mxu0 0.0
      %1496 = vmatprep.subr.mxu0 0.0
      %1497 = vmatpush1.msra.mxu0 0.0
      %1498 = vmatprep.subr.mxu0 0.0
      %1499 = vmatpush1.msra.mxu0 0.0
      %1500 = vmatprep.subr.mxu0 0.0
      %1501 = vmatpush1.msra.mxu0 0.0
      %1502 = vmatprep.subr.mxu0 0.0
      %1503 = vmatpush1.msra.mxu0 0.0
      %1504 = vmatprep.subr.mxu0 0.0
      %1505 = vmatpush1.msra.mxu0 0.0
      %1506 = vmatprep.subr.mxu0 0.0
      %1507 = vmatpush1.msra.mxu0 0.0
      %1508 = vmatprep.subr.mxu0 0.0
      %1509 = vmatpush1.msra.mxu0 0.0
      %1510 = vmatprep.subr.mxu0 0.0
      %1511 = vmatpush1.msra.mxu0 0.0
      %1512 = vmatprep.subr.mxu0 0.0
      %1513 = vmatpush1.msra.mxu0 0.0
      %1514 = vmatprep.subr.mxu0 0.0
      %1515 = vmatpush1.msra.mxu0 0.0
      %1516 = vmatprep.subr.mxu0 0.0
      %1517 = vmatpush1.msra.mxu0 0.0
      %1518 = vmatprep.subr.mxu0 0.0
      %1519 = vmatpush1.msra.mxu0 0.0
      %1520 = vmatprep.subr.mxu0 0.0
      %1521 = vmatpush1.msra.mxu0 0.0
      %1522 = vmatprep.mubr.f32.mxu0 0.0
      %1523 = vmatmul.mubr.f32.gmra.mrb[0].mxu0 %v1378
      %v1524 = vpop.f32.mrb[0].mxu0
      %v1525 = vadd.f32 0.0, %v1524
      %v1526 = vpop.f32.mrb[0].mxu0
      %1527 = vmatprep.mubr.f32.mxu0 0.0
      %1528 = vmatmul.mubr.f32.gmra.mrb[0].mxu0 %v1381
      %v1529 = vpop.f32.mrb[0].mxu0
      %v1530 = vadd.f32 0.0, %v1529
      %v1531 = vpop.f32.mrb[0].mxu0
      %1532 = vdwg.mxu0
      %v1534 = vsel %vm520, %v1375, 0
      %v1537 = vsel %vm520, %v1376, 0
      %1539 = vmatprep.subr.mxu0 0.0
      %1540 = vmatpush1.msra.mxu0 %v1450
      %1541 = vmatprep.subr.mxu0 0.0
      %1542 = vmatpush1.msra.mxu0 %v1455
      %1543 = vmatprep.subr.mxu0 0.0
      %1544 = vmatpush1.msra.mxu0 0.0
      %1545 = vmatprep.subr.mxu0 0.0
      %1546 = vmatpush1.msra.mxu0 0.0
      %1547 = vmatprep.subr.mxu0 0.0
      %1548 = vmatpush1.msra.mxu0 0.0
      %1549 = vmatprep.subr.mxu0 0.0
      %1550 = vmatpush1.msra.mxu0 0.0
      %1551 = vmatprep.subr.mxu0 0.0
      %1552 = vmatpush1.msra.mxu0 0.0
      %1553 = vmatprep.subr.mxu0 0.0
      %1554 = vmatpush1.msra.mxu0 0.0
      %1555 = vmatprep.subr.mxu0 0.0
      %1556 = vmatpush1.msra.mxu0 0.0
      %1557 = vmatprep.subr.mxu0 0.0
      %1558 = vmatpush1.msra.mxu0 0.0
      %1559 = vmatprep.subr.mxu0 0.0
      %1560 = vmatpush1.msra.mxu0 0.0
      %1561 = vmatprep.subr.mxu0 0.0
      %1562 = vmatpush1.msra.mxu0 0.0
      %1563 = vmatprep.subr.mxu0 0.0
      %1564 = vmatpush1.msra.mxu0 0.0
      %1565 = vmatprep.subr.mxu0 0.0
      %1566 = vmatpush1.msra.mxu0 0.0
      %1567 = vmatprep.subr.mxu0 0.0
      %1568 = vmatpush1.msra.mxu0 0.0
      %1569 = vmatprep.subr.mxu0 0.0
      %1570 = vmatpush1.msra.mxu0 0.0
      %1571 = vmatprep.subr.mxu0 0.0
      %1572 = vmatpush1.msra.mxu0 0.0
      %1573 = vmatprep.subr.mxu0 0.0
      %1574 = vmatpush1.msra.mxu0 0.0
      %1575 = vmatprep.subr.mxu0 0.0
      %1576 = vmatpush1.msra.mxu0 0.0
      %1577 = vmatprep.subr.mxu0 0.0
      %1578 = vmatpush1.msra.mxu0 0.0
      %1579 = vmatprep.subr.mxu0 0.0
      %1580 = vmatpush1.msra.mxu0 0.0
      %1581 = vmatprep.subr.mxu0 0.0
      %1582 = vmatpush1.msra.mxu0 0.0
      %1583 = vmatprep.subr.mxu0 0.0
      %1584 = vmatpush1.msra.mxu0 0.0
      %1585 = vmatprep.subr.mxu0 0.0
      %1586 = vmatpush1.msra.mxu0 0.0
      %1587 = vmatprep.subr.mxu0 0.0
      %1588 = vmatpush1.msra.mxu0 0.0
      %1589 = vmatprep.subr.mxu0 0.0
      %1590 = vmatpush1.msra.mxu0 0.0
      %1591 = vmatprep.subr.mxu0 0.0
      %1592 = vmatpush1.msra.mxu0 0.0
      %1593 = vmatprep.subr.mxu0 0.0
      %1594 = vmatpush1.msra.mxu0 0.0
      %1595 = vmatprep.subr.mxu0 0.0
      %1596 = vmatpush1.msra.mxu0 0.0
      %1597 = vmatprep.subr.mxu0 0.0
      %1598 = vmatpush1.msra.mxu0 0.0
      %1599 = vmatprep.subr.mxu0 0.0
      %1600 = vmatpush1.msra.mxu0 0.0
      %1601 = vmatprep.subr.mxu0 0.0
      %1602 = vmatpush1.msra.mxu0 0.0
      %1603 = vmatprep.mubr.f32.mxu0 0.0
      %1604 = vmatmul.mubr.f32.gmra.mrb[0].mxu0 %v1534
      %v1605 = vpop.f32.mrb[0].mxu0
      %v1606 = vadd.f32 %v1525, %v1605
      %v1607 = vpop.f32.mrb[0].mxu0
      %1608 = vmatprep.mubr.f32.mxu0 0.0
      %1609 = vmatmul.mubr.f32.gmra.mrb[0].mxu0 %v1537
      %v1610 = vpop.f32.mrb[0].mxu0
      %v1611 = vadd.f32 %v1530, %v1610
      %v1612 = vpop.f32.mrb[0].mxu0
      %1613 = vdwg.mxu0
      %v1614 = vlaneseq
      %v1615 = vshrl.u32 %v1614, 7
      %v1616 = vsub.s32 5, %v1615
      %v1617 = vrot.slane %v240, %v1616
      %v1618 = vadd.f32 %v1606, %v1617
      %v1619 = vadd.f32 %v1611, %v1617
      %v1620 = vmax.f32 %v1618, 0.0
      %v1621 = vmax.f32 %v1619, 0.0
      %v1623 = vsel %vm520, %v1620, 0
      %v1626 = vsel %vm520, %v1621, 0
      %1628 = vmatprep.subr.mxu0 0.0
      %1629 = vmatpush1.msra.mxu0 %v1363
      %1630 = vmatprep.subr.mxu0 0.0
      %1631 = vmatpush1.msra.mxu0 %v1364
      %1632 = vmatprep.subr.mxu0 0.0
      %1633 = vmatpush1.msra.mxu0 0.0
      %1634 = vmatprep.subr.mxu0 0.0
      %1635 = vmatpush1.msra.mxu0 0.0
      %1636 = vmatprep.subr.mxu0 0.0
      %1637 = vmatpush1.msra.mxu0 0.0
      %1638 = vmatprep.subr.mxu0 0.0
      %1639 = vmatpush1.msra.mxu0 0.0
      %1640 = vmatprep.subr.mxu0 0.0
      %1641 = vmatpush1.msra.mxu0 0.0
      %1642 = vmatprep.subr.mxu0 0.0
      %1643 = vmatpush1.msra.mxu0 0.0
      %1644 = vmatprep.subr.mxu0 0.0
      %1645 = vmatpush1.msra.mxu0 0.0
      %1646 = vmatprep.subr.mxu0 0.0
      %1647 = vmatpush1.msra.mxu0 0.0
      %1648 = vmatprep.subr.mxu0 0.0
      %1649 = vmatpush1.msra.mxu0 0.0
      %1650 = vmatprep.subr.mxu0 0.0
      %1651 = vmatpush1.msra.mxu0 0.0
      %1652 = vmatprep.subr.mxu0 0.0
      %1653 = vmatpush1.msra.mxu0 0.0
      %1654 = vmatprep.subr.mxu0 0.0
      %1655 = vmatpush1.msra.mxu0 0.0
      %1656 = vmatprep.subr.mxu0 0.0
      %1657 = vmatpush1.msra.mxu0 0.0
      %1658 = vmatprep.subr.mxu0 0.0
      %1659 = vmatpush1.msra.mxu0 0.0
      %1660 = vmatprep.subr.mxu0 0.0
      %1661 = vmatpush1.msra.mxu0 0.0
      %1662 = vmatprep.subr.mxu0 0.0
      %1663 = vmatpush1.msra.mxu0 0.0
      %1664 = vmatprep.subr.mxu0 0.0
      %1665 = vmatpush1.msra.mxu0 0.0
      %1666 = vmatprep.subr.mxu0 0.0
      %1667 = vmatpush1.msra.mxu0 0.0
      %1668 = vmatprep.subr.mxu0 0.0
      %1669 = vmatpush1.msra.mxu0 0.0
      %1670 = vmatprep.subr.mxu0 0.0
      %1671 = vmatpush1.msra.mxu0 0.0
      %1672 = vmatprep.subr.mxu0 0.0
      %1673 = vmatpush1.msra.mxu0 0.0
      %1674 = vmatprep.subr.mxu0 0.0
      %1675 = vmatpush1.msra.mxu0 0.0
      %1676 = vmatprep.subr.mxu0 0.0
      %1677 = vmatpush1.msra.mxu0 0.0
      %1678 = vmatprep.subr.mxu0 0.0
      %1679 = vmatpush1.msra.mxu0 0.0
      %1680 = vmatprep.subr.mxu0 0.0
      %1681 = vmatpush1.msra.mxu0 0.0
      %1682 = vmatprep.subr.mxu0 0.0
      %1683 = vmatpush1.msra.mxu0 0.0
      %1684 = vmatprep.subr.mxu0 0.0
      %1685 = vmatpush1.msra.mxu0 0.0
      %1686 = vmatprep.subr.mxu0 0.0
      %1687 = vmatpush1.msra.mxu0 0.0
      %1688 = vmatprep.subr.mxu0 0.0
      %1689 = vmatpush1.msra.mxu0 0.0
      %1690 = vmatprep.subr.mxu0 0.0
      %1691 = vmatpush1.msra.mxu0 0.0
      %1692 = vmatprep.mubr.f32.mxu0 0.0
      %1693 = vmatmul.mubr.f32.gmra.mrb[0].mxu0 %v1623
      %v1694 = vpop.f32.mrb[0].mxu0
      %v1695 = vadd.f32 0.0, %v1694
      %v1696 = vpop.f32.mrb[0].mxu0
      %1697 = vmatprep.mubr.f32.mxu0 0.0
      %1698 = vmatmul.mubr.f32.gmra.mrb[0].mxu0 %v1626
      %v1699 = vpop.f32.mrb[0].mxu0
      %v1700 = vadd.f32 0.0, %v1699
      %v1701 = vpop.f32.mrb[0].mxu0
      %1702 = vdwg.mxu0
      %1703 = vmatprep.subr.mxu0 0.0
      %1704 = vmatpush1.msra.mxu0 %v1365
      %1705 = vmatprep.subr.mxu0 0.0
      %1706 = vmatpush1.msra.mxu0 %v1366
      %1707 = vmatprep.subr.mxu0 0.0
      %1708 = vmatpush1.msra.mxu0 0.0
      %1709 = vmatprep.subr.mxu0 0.0
      %1710 = vmatpush1.msra.mxu0 0.0
      %1711 = vmatprep.subr.mxu0 0.0
      %1712 = vmatpush1.msra.mxu0 0.0
      %1713 = vmatprep.subr.mxu0 0.0
      %1714 = vmatpush1.msra.mxu0 0.0
      %1715 = vmatprep.subr.mxu0 0.0
      %1716 = vmatpush1.msra.mxu0 0.0
      %1717 = vmatprep.subr.mxu0 0.0
      %1718 = vmatpush1.msra.mxu0 0.0
      %1719 = vmatprep.subr.mxu0 0.0
      %1720 = vmatpush1.msra.mxu0 0.0
      %1721 = vmatprep.subr.mxu0 0.0
      %1722 = vmatpush1.msra.mxu0 0.0
      %1723 = vmatprep.subr.mxu0 0.0
      %1724 = vmatpush1.msra.mxu0 0.0
      %1725 = vmatprep.subr.mxu0 0.0
      %1726 = vmatpush1.msra.mxu0 0.0
      %1727 = vmatprep.subr.mxu0 0.0
      %1728 = vmatpush1.msra.mxu0 0.0
      %1729 = vmatprep.subr.mxu0 0.0
      %1730 = vmatpush1.msra.mxu0 0.0
      %1731 = vmatprep.subr.mxu0 0.0
      %1732 = vmatpush1.msra.mxu0 0.0
      %1733 = vmatprep.subr.mxu0 0.0
      %1734 = vmatpush1.msra.mxu0 0.0
      %1735 = vmatprep.subr.mxu0 0.0
      %1736 = vmatpush1.msra.mxu0 0.0
      %1737 = vmatprep.subr.mxu0 0.0
      %1738 = vmatpush1.msra.mxu0 0.0
      %1739 = vmatprep.subr.mxu0 0.0
      %1740 = vmatpush1.msra.mxu0 0.0
      %1741 = vmatprep.subr.mxu0 0.0
      %1742 = vmatpush1.msra.mxu0 0.0
      %1743 = vmatprep.subr.mxu0 0.0
      %1744 = vmatpush1.msra.mxu0 0.0
      %1745 = vmatprep.subr.mxu0 0.0
      %1746 = vmatpush1.msra.mxu0 0.0
      %1747 = vmatprep.subr.mxu0 0.0
      %1748 = vmatpush1.msra.mxu0 0.0
      %1749 = vmatprep.subr.mxu0 0.0
      %1750 = vmatpush1.msra.mxu0 0.0
      %1751 = vmatprep.subr.mxu0 0.0
      %1752 = vmatpush1.msra.mxu0 0.0
      %1753 = vmatprep.subr.mxu0 0.0
      %1754 = vmatpush1.msra.mxu0 0.0
      %1755 = vmatprep.subr.mxu0 0.0
      %1756 = vmatpush1.msra.mxu0 0.0
      %1757 = vmatprep.subr.mxu0 0.0
      %1758 = vmatpush1.msra.mxu0 0.0
      %1759 = vmatprep.subr.mxu0 0.0
      %1760 = vmatpush1.msra.mxu0 0.0
      %1761 = vmatprep.subr.mxu0 0.0
      %1762 = vmatpush1.msra.mxu0 0.0
      %1763 = vmatprep.subr.mxu0 0.0
      %1764 = vmatpush1.msra.mxu0 0.0
      %1765 = vmatprep.subr.mxu0 0.0
      %1766 = vmatpush1.msra.mxu0 0.0
      %1767 = vmatprep.mubr.f32.mxu0 0.0
      %1768 = vmatmul.mubr.f32.gmra.mrb[0].mxu0 %v1623
      %v1769 = vpop.f32.mrb[0].mxu0
      %v1770 = vadd.f32 0.0, %v1769
      %v1771 = vpop.f32.mrb[0].mxu0
      %1772 = vmatprep.mubr.f32.mxu0 0.0
      %1773 = vmatmul.mubr.f32.gmra.mrb[0].mxu0 %v1626
      %v1774 = vpop.f32.mrb[0].mxu0
      %v1775 = vadd.f32 0.0, %v1774
      %v1776 = vpop.f32.mrb[0].mxu0
      %1777 = vdwg.mxu0
      %1778 = vmatprep.subr.mxu0 0.0
      %1779 = vmatpush1.msra.mxu0 %v1695
      %1780 = vmatprep.subr.mxu0 0.0
      %1781 = vmatpush1.msra.mxu0 %v1700
      %1782 = vmatprep.subr.mxu0 0.0
      %1783 = vmatpush1.msra.mxu0 0.0
      %1784 = vmatprep.subr.mxu0 0.0
      %1785 = vmatpush1.msra.mxu0 0.0
      %1786 = vmatprep.subr.mxu0 0.0
      %1787 = vmatpush1.msra.mxu0 0.0
      %1788 = vmatprep.subr.mxu0 0.0
      %1789 = vmatpush1.msra.mxu0 0.0
      %1790 = vmatprep.subr.mxu0 0.0
      %1791 = vmatpush1.msra.mxu0 0.0
      %1792 = vmatprep.subr.mxu0 0.0
      %1793 = vmatpush1.msra.mxu0 0.0
      %1794 = vmatprep.subr.mxu0 0.0
      %1795 = vmatpush1.msra.mxu0 0.0
      %1796 = vmatprep.subr.mxu0 0.0
      %1797 = vmatpush1.msra.mxu0 0.0
      %1798 = vmatprep.subr.mxu0 0.0
      %1799 = vmatpush1.msra.mxu0 0.0
      %1800 = vmatprep.subr.mxu0 0.0
      %1801 = vmatpush1.msra.mxu0 0.0
      %1802 = vmatprep.subr.mxu0 0.0
      %1803 = vmatpush1.msra.mxu0 0.0
      %1804 = vmatprep.subr.mxu0 0.0
      %1805 = vmatpush1.msra.mxu0 0.0
      %1806 = vmatprep.subr.mxu0 0.0
      %1807 = vmatpush1.msra.mxu0 0.0
      %1808 = vmatprep.subr.mxu0 0.0
      %1809 = vmatpush1.msra.mxu0 0.0
      %1810 = vmatprep.subr.mxu0 0.0
      %1811 = vmatpush1.msra.mxu0 0.0
      %1812 = vmatprep.subr.mxu0 0.0
      %1813 = vmatpush1.msra.mxu0 0.0
      %1814 = vmatprep.subr.mxu0 0.0
      %1815 = vmatpush1.msra.mxu0 0.0
      %1816 = vmatprep.subr.mxu0 0.0
      %1817 = vmatpush1.msra.mxu0 0.0
      %1818 = vmatprep.subr.mxu0 0.0
      %1819 = vmatpush1.msra.mxu0 0.0
      %1820 = vmatprep.subr.mxu0 0.0
      %1821 = vmatpush1.msra.mxu0 0.0
      %1822 = vmatprep.subr.mxu0 0.0
      %1823 = vmatpush1.msra.mxu0 0.0
      %1824 = vmatprep.subr.mxu0 0.0
      %1825 = vmatpush1.msra.mxu0 0.0
      %1826 = vmatprep.subr.mxu0 0.0
      %1827 = vmatpush1.msra.mxu0 0.0
      %1828 = vmatprep.subr.mxu0 0.0
      %1829 = vmatpush1.msra.mxu0 0.0
      %1830 = vmatprep.subr.mxu0 0.0
      %1831 = vmatpush1.msra.mxu0 0.0
      %1832 = vmatprep.subr.mxu0 0.0
      %1833 = vmatpush1.msra.mxu0 0.0
      %1834 = vmatprep.subr.mxu0 0.0
      %1835 = vmatpush1.msra.mxu0 0.0
      %1836 = vmatprep.subr.mxu0 0.0
      %1837 = vmatpush1.msra.mxu0 0.0
      %1838 = vmatprep.subr.mxu0 0.0
      %1839 = vmatpush1.msra.mxu0 0.0
      %1840 = vmatprep.subr.mxu0 0.0
      %1841 = vmatpush1.msra.mxu0 0.0
      %1842 = vmatprep.mubr.f32.mxu0 0.0
      %1843 = vmatmul.mubr.f32.gmra.mrb[0].mxu0 %v1534
      %v1844 = vpop.f32.mrb[0].mxu0
      %v1845 = vadd.f32 %v1770, %v1844
      %v1846 = vpop.f32.mrb[0].mxu0
      %1847 = vmatprep.mubr.f32.mxu0 0.0
      %1848 = vmatmul.mubr.f32.gmra.mrb[0].mxu0 %v1537
      %v1849 = vpop.f32.mrb[0].mxu0
      %v1850 = vadd.f32 %v1775, %v1849
      %v1851 = vpop.f32.mrb[0].mxu0
      %1852 = vdwg.mxu0
      %v1853 = vlaneseq
      %v1854 = vshrl.u32 %v1853, 7
      %v1855 = vsub.s32 6, %v1854
      %v1856 = vrot.slane %v240, %v1855
      %v1857 = vadd.f32 %v1845, %v1856
      %v1858 = vadd.f32 %v1850, %v1856
      %v1859 = vmax.f32 %v1857, 0.0
      %v1860 = vmax.f32 %v1858, 0.0
      %v1861 = vadd.f32 %v1859, %v1357
      %v1862 = vadd.f32 %v1860, %v1358
      %v1863 = vmax.f32 %v1861, 0.0
      %v1864 = vmax.f32 %v1862, 0.0
      %v1865 = vmul.u32 %v236, 8
      %v1866 = vadd.s32 %v1865, 7
      %vm1867 = vcmp.eq.s32.totalorder %v239, %v1866
      %v1868 = vsel %vm1867, 1, 0
      %v1869 = vcvt.s32.f32 %v1868
      %v1871 = vsel %vm520, %v1869, 0
      %1873 = vmatprep.subr.mxu0 0.0
      %1874 = vmatpush1.msra.mxu0 %v233
      %1875 = vmatprep.subr.mxu0 0.0
      %1876 = vmatpush1.msra.mxu0 %v234
      %1877 = vmatprep.subr.mxu0 0.0
      %1878 = vmatpush1.msra.mxu0 0.0
      %1879 = vmatprep.subr.mxu0 0.0
      %1880 = vmatpush1.msra.mxu0 0.0
      %1881 = vmatprep.subr.mxu0 0.0
      %1882 = vmatpush1.msra.mxu0 0.0
      %1883 = vmatprep.subr.mxu0 0.0
      %1884 = vmatpush1.msra.mxu0 0.0
      %1885 = vmatprep.subr.mxu0 0.0
      %1886 = vmatpush1.msra.mxu0 0.0
      %1887 = vmatprep.subr.mxu0 0.0
      %1888 = vmatpush1.msra.mxu0 0.0
      %1889 = vmatprep.subr.mxu0 0.0
      %1890 = vmatpush1.msra.mxu0 0.0
      %1891 = vmatprep.subr.mxu0 0.0
      %1892 = vmatpush1.msra.mxu0 0.0
      %1893 = vmatprep.subr.mxu0 0.0
      %1894 = vmatpush1.msra.mxu0 0.0
      %1895 = vmatprep.subr.mxu0 0.0
      %1896 = vmatpush1.msra.mxu0 0.0
      %1897 = vmatprep.subr.mxu0 0.0
      %1898 = vmatpush1.msra.mxu0 0.0
      %1899 = vmatprep.subr.mxu0 0.0
      %1900 = vmatpush1.msra.mxu0 0.0
      %1901 = vmatprep.subr.mxu0 0.0
      %1902 = vmatpush1.msra.mxu0 0.0
      %1903 = vmatprep.subr.mxu0 0.0
      %1904 = vmatpush1.msra.mxu0 0.0
      %1905 = vmatprep.subr.mxu0 0.0
      %1906 = vmatpush1.msra.mxu0 0.0
      %1907 = vmatprep.subr.mxu0 0.0
      %1908 = vmatpush1.msra.mxu0 0.0
      %1909 = vmatprep.subr.mxu0 0.0
      %1910 = vmatpush1.msra.mxu0 0.0
      %1911 = vmatprep.subr.mxu0 0.0
      %1912 = vmatpush1.msra.mxu0 0.0
      %1913 = vmatprep.subr.mxu0 0.0
      %1914 = vmatpush1.msra.mxu0 0.0
      %1915 = vmatprep.subr.mxu0 0.0
      %1916 = vmatpush1.msra.mxu0 0.0
      %1917 = vmatprep.subr.mxu0 0.0
      %1918 = vmatpush1.msra.mxu0 0.0
      %1919 = vmatprep.subr.mxu0 0.0
      %1920 = vmatpush1.msra.mxu0 0.0
      %1921 = vmatprep.subr.mxu0 0.0
      %1922 = vmatpush1.msra.mxu0 0.0
      %1923 = vmatprep.subr.mxu0 0.0
      %1924 = vmatpush1.msra.mxu0 0.0
      %1925 = vmatprep.subr.mxu0 0.0
      %1926 = vmatpush1.msra.mxu0 0.0
      %1927 = vmatprep.subr.mxu0 0.0
      %1928 = vmatpush1.msra.mxu0 0.0
      %1929 = vmatprep.subr.mxu0 0.0
      %1930 = vmatpush1.msra.mxu0 0.0
      %1931 = vmatprep.subr.mxu0 0.0
      %1932 = vmatpush1.msra.mxu0 0.0
      %1933 = vmatprep.subr.mxu0 0.0
      %1934 = vmatpush1.msra.mxu0 0.0
      %1935 = vmatprep.subr.mxu0 0.0
      %1936 = vmatpush1.msra.mxu0 0.0
      %1937 = vmatprep.mubr.f32.mxu0 0.0
      %1938 = vmatmul.mubr.f32.gmra.mrb[0].mxu0 %v1871
      %v1939 = vpop.f32.mrb[0].mxu0
      %v1940 = vadd.f32 0.0, %v1939
      %v1941 = vpop.f32.mrb[0].mxu0
      %1942 = vdwg.mxu0
      %1943 = vmatprep.subr.mxu0 0.0
      %1944 = vmatpush1.msra.mxu0 %v1863
      %1945 = vmatprep.subr.mxu0 0.0
      %1946 = vmatpush1.msra.mxu0 %v1864
      %1947 = vmatprep.subr.mxu0 0.0
      %1948 = vmatpush1.msra.mxu0 0.0
      %1949 = vmatprep.subr.mxu0 0.0
      %1950 = vmatpush1.msra.mxu0 0.0
      %1951 = vmatprep.subr.mxu0 0.0
      %1952 = vmatpush1.msra.mxu0 0.0
      %1953 = vmatprep.subr.mxu0 0.0
      %1954 = vmatpush1.msra.mxu0 0.0
      %1955 = vmatprep.subr.mxu0 0.0
      %1956 = vmatpush1.msra.mxu0 0.0
      %1957 = vmatprep.subr.mxu0 0.0
      %1958 = vmatpush1.msra.mxu0 0.0
      %1959 = vmatprep.subr.mxu0 0.0
      %1960 = vmatpush1.msra.mxu0 0.0
      %1961 = vmatprep.subr.mxu0 0.0
      %1962 = vmatpush1.msra.mxu0 0.0
      %1963 = vmatprep.subr.mxu0 0.0
      %1964 = vmatpush1.msra.mxu0 0.0
      %1965 = vmatprep.subr.mxu0 0.0
      %1966 = vmatpush1.msra.mxu0 0.0
      %1967 = vmatprep.subr.mxu0 0.0
      %1968 = vmatpush1.msra.mxu0 0.0
      %1969 = vmatprep.subr.mxu0 0.0
      %1970 = vmatpush1.msra.mxu0 0.0
      %1971 = vmatprep.subr.mxu0 0.0
      %1972 = vmatpush1.msra.mxu0 0.0
      %1973 = vmatprep.subr.mxu0 0.0
      %1974 = vmatpush1.msra.mxu0 0.0
      %1975 = vmatprep.subr.mxu0 0.0
      %1976 = vmatpush1.msra.mxu0 0.0
      %1977 = vmatprep.subr.mxu0 0.0
      %1978 = vmatpush1.msra.mxu0 0.0
      %1979 = vmatprep.subr.mxu0 0.0
      %1980 = vmatpush1.msra.mxu0 0.0
      %1981 = vmatprep.subr.mxu0 0.0
      %1982 = vmatpush1.msra.mxu0 0.0
      %1983 = vmatprep.subr.mxu0 0.0
      %1984 = vmatpush1.msra.mxu0 0.0
      %1985 = vmatprep.subr.mxu0 0.0
      %1986 = vmatpush1.msra.mxu0 0.0
      %1987 = vmatprep.subr.mxu0 0.0
      %1988 = vmatpush1.msra.mxu0 0.0
      %1989 = vmatprep.subr.mxu0 0.0
      %1990 = vmatpush1.msra.mxu0 0.0
      %1991 = vmatprep.subr.mxu0 0.0
      %1992 = vmatpush1.msra.mxu0 0.0
      %1993 = vmatprep.subr.mxu0 0.0
      %1994 = vmatpush1.msra.mxu0 0.0
      %1995 = vmatprep.subr.mxu0 0.0
      %1996 = vmatpush1.msra.mxu0 0.0
      %1997 = vmatprep.subr.mxu0 0.0
      %1998 = vmatpush1.msra.mxu0 0.0
      %1999 = vmatprep.subr.mxu0 0.0
      %2000 = vmatpush1.msra.mxu0 0.0
      %2001 = vmatprep.subr.mxu0 0.0
      %2002 = vmatpush1.msra.mxu0 0.0
      %2003 = vmatprep.subr.mxu0 0.0
      %2004 = vmatpush1.msra.mxu0 0.0
      %2005 = vmatprep.subr.mxu0 0.0
      %2006 = vmatpush1.msra.mxu0 0.0
      %2007 = vmatprep.mubr.f32.mxu0 0.0
      %2008 = vmatmul.mubr.f32.gmra.mrb[0].mxu0 %v1871
      %v2009 = vpop.f32.mrb[0].mxu0
      %v2010 = vadd.f32 0.0, %v2009
      %v2011 = vpop.f32.mrb[0].mxu0
      %2012 = vdwg.mxu0
      %v2013 = vld [vmem:[%s228] sm:$0xff]
      %v2014 = vld [vmem:[%s228 + $0x10] sm:$0xff]
      %v2015 = vld [vmem:[%s228 + $0x18] sm:$0xff]
      %v2016 = vld [vmem:[%s228 + $0x20] sm:$0xff]
      %v2017 = vld [vmem:[%s228 + $0x28] sm:$0xff]
      %v2018 = vld [vmem:[%s228 + $0x30] sm:$0xff]
      %v2019 = vld [vmem:[%s228 + $0x38] sm:$0xff]
      %v2020 = vld [vmem:[%s228 + $0x40] sm:$0xff]
      %v2021 = vld [vmem:[%s228 + $0x48] sm:$0xff]
      %v2022 = vld [vmem:[%s228 + $0x50] sm:$0xff]
      %v2023 = vld [vmem:[%s228 + $0x58] sm:$0xff]
      %v2024 = vld [vmem:[%s228 + $0x60] sm:$0x1]
      %v2025 = vld [vmem:[%s228 + $0x61] sm:$0x1]
      %v2026 = vlaneseq
      %v2027 = vshrl.u32 %v2026, 7
      %v2028 = vsub.s32 0, %v2027
      %v2029 = vrot.slane %v2024, %v2028
      %v2031 = vsel %vm246, %v1940, 0
      %2033 = vmatprep.subr.mxu0 0.0
      %2034 = vmatpush1.msra.mxu0 %v2013
      %2035 = vmatprep.subr.mxu0 0.0
      %2036 = vmatpush1.msra.mxu0 0.0
      %2037 = vmatprep.subr.mxu0 0.0
      %2038 = vmatpush1.msra.mxu0 0.0
      %2039 = vmatprep.subr.mxu0 0.0
      %2040 = vmatpush1.msra.mxu0 0.0
      %2041 = vmatprep.subr.mxu0 0.0
      %2042 = vmatpush1.msra.mxu0 0.0
      %2043 = vmatprep.subr.mxu0 0.0
      %2044 = vmatpush1.msra.mxu0 0.0
      %2045 = vmatprep.subr.mxu0 0.0
      %2046 = vmatpush1.msra.mxu0 0.0
      %2047 = vmatprep.subr.mxu0 0.0
      %2048 = vmatpush1.msra.mxu0 0.0
      %2049 = vmatprep.subr.mxu0 0.0
      %2050 = vmatpush1.msra.mxu0 0.0
      %2051 = vmatprep.subr.mxu0 0.0
      %2052 = vmatpush1.msra.mxu0 0.0
      %2053 = vmatprep.subr.mxu0 0.0
      %2054 = vmatpush1.msra.mxu0 0.0
      %2055 = vmatprep.subr.mxu0 0.0
      %2056 = vmatpush1.msra.mxu0 0.0
      %2057 = vmatprep.subr.mxu0 0.0
      %2058 = vmatpush1.msra.mxu0 0.0
      %2059 = vmatprep.subr.mxu0 0.0
      %2060 = vmatpush1.msra.mxu0 0.0
      %2061 = vmatprep.subr.mxu0 0.0
      %2062 = vmatpush1.msra.mxu0 0.0
      %2063 = vmatprep.subr.mxu0 0.0
      %2064 = vmatpush1.msra.mxu0 0.0
      %2065 = vmatprep.subr.mxu0 0.0
      %2066 = vmatpush1.msra.mxu0 0.0
      %2067 = vmatprep.subr.mxu0 0.0
      %2068 = vmatpush1.msra.mxu0 0.0
      %2069 = vmatprep.subr.mxu0 0.0
      %2070 = vmatpush1.msra.mxu0 0.0
      %2071 = vmatprep.subr.mxu0 0.0
      %2072 = vmatpush1.msra.mxu0 0.0
      %2073 = vmatprep.subr.mxu0 0.0
      %2074 = vmatpush1.msra.mxu0 0.0
      %2075 = vmatprep.subr.mxu0 0.0
      %2076 = vmatpush1.msra.mxu0 0.0
      %2077 = vmatprep.subr.mxu0 0.0
      %2078 = vmatpush1.msra.mxu0 0.0
      %2079 = vmatprep.subr.mxu0 0.0
      %2080 = vmatpush1.msra.mxu0 0.0
      %2081 = vmatprep.subr.mxu0 0.0
      %2082 = vmatpush1.msra.mxu0 0.0
      %2083 = vmatprep.subr.mxu0 0.0
      %2084 = vmatpush1.msra.mxu0 0.0
      %2085 = vmatprep.subr.mxu0 0.0
      %2086 = vmatpush1.msra.mxu0 0.0
      %2087 = vmatprep.subr.mxu0 0.0
      %2088 = vmatpush1.msra.mxu0 0.0
      %2089 = vmatprep.subr.mxu0 0.0
      %2090 = vmatpush1.msra.mxu0 0.0
      %2091 = vmatprep.subr.mxu0 0.0
      %2092 = vmatpush1.msra.mxu0 0.0
      %2093 = vmatprep.subr.mxu0 0.0
      %2094 = vmatpush1.msra.mxu0 0.0
      %2095 = vmatprep.subr.mxu0 0.0
      %2096 = vmatpush1.msra.mxu0 0.0
      %2097 = vmatprep.mubr.f32.mxu0 0.0
      %2098 = vmatmul.mubr.f32.gmra.mrb[0].mxu0 %v2031
      %v2099 = vpop.f32.mrb[0].mxu0
      %v2100 = vadd.f32 %v2029, %v2099
      %v2101 = vpop.f32.mrb[0].mxu0
      %2102 = vdwg.mxu0
      %v2103 = vmax.f32 %v2100, 0.0
      %v2105 = vsel %vm520, %v2010, 0
      %2107 = vmatprep.subr.mxu0 0.0
      %2108 = vmatpush1.msra.mxu0 %v2022
      %2109 = vmatprep.subr.mxu0 0.0
      %2110 = vmatpush1.msra.mxu0 %v2023
      %2111 = vmatprep.subr.mxu0 0.0
      %2112 = vmatpush1.msra.mxu0 0.0
      %2113 = vmatprep.subr.mxu0 0.0
      %2114 = vmatpush1.msra.mxu0 0.0
      %2115 = vmatprep.subr.mxu0 0.0
      %2116 = vmatpush1.msra.mxu0 0.0
      %2117 = vmatprep.subr.mxu0 0.0
      %2118 = vmatpush1.msra.mxu0 0.0
      %2119 = vmatprep.subr.mxu0 0.0
      %2120 = vmatpush1.msra.mxu0 0.0
      %2121 = vmatprep.subr.mxu0 0.0
      %2122 = vmatpush1.msra.mxu0 0.0
      %2123 = vmatprep.subr.mxu0 0.0
      %2124 = vmatpush1.msra.mxu0 0.0
      %2125 = vmatprep.subr.mxu0 0.0
      %2126 = vmatpush1.msra.mxu0 0.0
      %2127 = vmatprep.subr.mxu0 0.0
      %2128 = vmatpush1.msra.mxu0 0.0
      %2129 = vmatprep.subr.mxu0 0.0
      %2130 = vmatpush1.msra.mxu0 0.0
      %2131 = vmatprep.subr.mxu0 0.0
      %2132 = vmatpush1.msra.mxu0 0.0
      %2133 = vmatprep.subr.mxu0 0.0
      %2134 = vmatpush1.msra.mxu0 0.0
      %2135 = vmatprep.subr.mxu0 0.0
      %2136 = vmatpush1.msra.mxu0 0.0
      %2137 = vmatprep.subr.mxu0 0.0
      %2138 = vmatpush1.msra.mxu0 0.0
      %2139 = vmatprep.subr.mxu0 0.0
      %2140 = vmatpush1.msra.mxu0 0.0
      %2141 = vmatprep.subr.mxu0 0.0
      %2142 = vmatpush1.msra.mxu0 0.0
      %2143 = vmatprep.subr.mxu0 0.0
      %2144 = vmatpush1.msra.mxu0 0.0
      %2145 = vmatprep.subr.mxu0 0.0
      %2146 = vmatpush1.msra.mxu0 0.0
      %2147 = vmatprep.subr.mxu0 0.0
      %2148 = vmatpush1.msra.mxu0 0.0
      %2149 = vmatprep.subr.mxu0 0.0
      %2150 = vmatpush1.msra.mxu0 0.0
      %2151 = vmatprep.subr.mxu0 0.0
      %2152 = vmatpush1.msra.mxu0 0.0
      %2153 = vmatprep.subr.mxu0 0.0
      %2154 = vmatpush1.msra.mxu0 0.0
      %2155 = vmatprep.subr.mxu0 0.0
      %2156 = vmatpush1.msra.mxu0 0.0
      %2157 = vmatprep.subr.mxu0 0.0
      %2158 = vmatpush1.msra.mxu0 0.0
      %2159 = vmatprep.subr.mxu0 0.0
      %2160 = vmatpush1.msra.mxu0 0.0
      %2161 = vmatprep.subr.mxu0 0.0
      %2162 = vmatpush1.msra.mxu0 0.0
      %2163 = vmatprep.subr.mxu0 0.0
      %2164 = vmatpush1.msra.mxu0 0.0
      %2165 = vmatprep.subr.mxu0 0.0
      %2166 = vmatpush1.msra.mxu0 0.0
      %2167 = vmatprep.subr.mxu0 0.0
      %2168 = vmatpush1.msra.mxu0 0.0
      %2169 = vmatprep.subr.mxu0 0.0
      %2170 = vmatpush1.msra.mxu0 0.0
      %2171 = vmatprep.mubr.f32.mxu0 0.0
      %2172 = vmatmul.mubr.f32.gmra.mrb[0].mxu0 %v2105
      %v2173 = vpop.f32.mrb[0].mxu0
      %v2174 = vadd.f32 0.0, %v2173
      %v2175 = vpop.f32.mrb[0].mxu0
      %2176 = vdwg.mxu0
      %vm2177 = vcmask 523264
      %v2179 = vsel %vm2177, %v2103, 0
      %2181 = vmatprep.subr.mxu0 0.0
      %2182 = vmatpush1.msra.mxu0 %v2014
      %2183 = vmatprep.subr.mxu0 0.0
      %2184 = vmatpush1.msra.mxu0 %v2015
      %2185 = vmatprep.subr.mxu0 0.0
      %2186 = vmatpush1.msra.mxu0 %v2016
      %2187 = vmatprep.subr.mxu0 0.0
      %2188 = vmatpush1.msra.mxu0 %v2017
      %2189 = vmatprep.subr.mxu0 0.0
      %2190 = vmatpush1.msra.mxu0 %v2018
      %2191 = vmatprep.subr.mxu0 0.0
      %2192 = vmatpush1.msra.mxu0 %v2019
      %2193 = vmatprep.subr.mxu0 0.0
      %2194 = vmatpush1.msra.mxu0 %v2020
      %2195 = vmatprep.subr.mxu0 0.0
      %2196 = vmatpush1.msra.mxu0 %v2021
      %2197 = vmatprep.subr.mxu0 0.0
      %2198 = vmatpush1.msra.mxu0 0.0
      %2199 = vmatprep.subr.mxu0 0.0
      %2200 = vmatpush1.msra.mxu0 0.0
      %2201 = vmatprep.subr.mxu0 0.0
      %2202 = vmatpush1.msra.mxu0 0.0
      %2203 = vmatprep.subr.mxu0 0.0
      %2204 = vmatpush1.msra.mxu0 0.0
      %2205 = vmatprep.subr.mxu0 0.0
      %2206 = vmatpush1.msra.mxu0 0.0
      %2207 = vmatprep.subr.mxu0 0.0
      %2208 = vmatpush1.msra.mxu0 0.0
      %2209 = vmatprep.subr.mxu0 0.0
      %2210 = vmatpush1.msra.mxu0 0.0
      %2211 = vmatprep.subr.mxu0 0.0
      %2212 = vmatpush1.msra.mxu0 0.0
      %2213 = vmatprep.subr.mxu0 0.0
      %2214 = vmatpush1.msra.mxu0 0.0
      %2215 = vmatprep.subr.mxu0 0.0
      %2216 = vmatpush1.msra.mxu0 0.0
      %2217 = vmatprep.subr.mxu0 0.0
      %2218 = vmatpush1.msra.mxu0 0.0
      %2219 = vmatprep.subr.mxu0 0.0
      %2220 = vmatpush1.msra.mxu0 0.0
      %2221 = vmatprep.subr.mxu0 0.0
      %2222 = vmatpush1.msra.mxu0 0.0
      %2223 = vmatprep.subr.mxu0 0.0
      %2224 = vmatpush1.msra.mxu0 0.0
      %2225 = vmatprep.subr.mxu0 0.0
      %2226 = vmatpush1.msra.mxu0 0.0
      %2227 = vmatprep.subr.mxu0 0.0
      %2228 = vmatpush1.msra.mxu0 0.0
      %2229 = vmatprep.subr.mxu0 0.0
      %2230 = vmatpush1.msra.mxu0 0.0
      %2231 = vmatprep.subr.mxu0 0.0
      %2232 = vmatpush1.msra.mxu0 0.0
      %2233 = vmatprep.subr.mxu0 0.0
      %2234 = vmatpush1.msra.mxu0 0.0
      %2235 = vmatprep.subr.mxu0 0.0
      %2236 = vmatpush1.msra.mxu0 0.0
      %2237 = vmatprep.subr.mxu0 0.0
      %2238 = vmatpush1.msra.mxu0 0.0
      %2239 = vmatprep.subr.mxu0 0.0
      %2240 = vmatpush1.msra.mxu0 0.0
      %2241 = vmatprep.subr.mxu0 0.0
      %2242 = vmatpush1.msra.mxu0 0.0
      %2243 = vmatprep.subr.mxu0 0.0
      %2244 = vmatpush1.msra.mxu0 0.0
      %2245 = vmatprep.mubr.f32.mxu0 0.0
      %2246 = vmatmul.mubr.f32.gmra.mrb[0].mxu0 %v2179
      %v2247 = vpop.f32.mrb[0].mxu0
      %v2248 = vadd.f32 %v2174, %v2247
      %v2249 = vpop.f32.mrb[0].mxu0
      %2250 = vdwg.mxu0
      %v2251 = vlaneseq
      %v2252 = vshrl.u32 %v2251, 7
      %v2253 = vsub.s32 0, %v2252
      %v2254 = vrot.slane %v2025, %v2253
      %v2255 = vadd.f32 %v2248, %v2254
      %v2256 = vmax.f32 %v2255, 0.0
      %vm2257 = vcmask 517120
      %2258 = vst.msk [vmem:[%s232] sm:$0x3] %vm2257, %v2256
      %p2259 = scmp.lt.s32.totalorder %s15, 1
      %s2260 = scalar_select %p2259, %s15, 1
      %s2261 = smul.addr %s2260, 2
      %s2262 = scalar_lea.vmem %s4, %s2261
      // Predicated region
      $region37: #{custom_network_forward.1} parent=35 // pred_check
        %p2263 = pneg %p132
      $region38: #{custom_network_forward.1} parent=35 // pred_check_branch
        %2265 = sbr.rel (%p2263) target = $region40
      $region39: #{custom_network_forward.1} parent=35 // pred_region
        _
      $region40: #{custom_network_forward.1} parent=35 // pred_fallthru
        _
    $region36: #{custom_network_forward.1} parent=5 // pred_fallthru
      _
    %p2266 = scmp.le.s32.totalorder 2, %s10
    // Predicated region
    $region41: #{custom_network_forward.1} parent=5 // pred_check
      %p2267 = pneg %p2266
    $region42: #{custom_network_forward.1} parent=5 // pred_check_branch
      %2269 = sbr.rel (%p2267) target = $region44
    $region43: #{custom_network_forward.1} parent=5 // pred_region
      %s2270 = ssub.s32 %s10, 2
      // Predicated region
      $region45: #{custom_network_forward.1} parent=43 // pred_check
        %p2271 = pneg %p138
      $region46: #{custom_network_forward.1} parent=43 // pred_check_branch
        %2273 = sbr.rel (%p2271) target = $region48
      $region47: #{custom_network_forward.1} parent=43 // pred_region
        %p2274 = scmp.lt.s32.totalorder %s16, 1
        %s2275 = scalar_select %p2274, %s16, 1
        %s2276 = smul.addr %s2275, 2
        %s2277 = scalar_lea.vmem %s4, %s2276
      $region48: #{custom_network_forward.1} parent=43 // pred_fallthru
        _
    $region44: #{custom_network_forward.1} parent=5 // pred_fallthru
      _
  $region6: #{custom_network_forward.1} parent=0 // loop_footer
    %s14 = sadd.s32 1, %s10
  $region7: #{custom_network_forward.1} parent=0 // loop_footer_branch
    %9 = sbr.rel target = $region3
  $region8: #{custom_network_forward.1} parent=0 // loop_exit
    _

</llo_original>
